<compile_context>
chip_gen: v7x
topology: tpu7x:2x2x1
jax: 0.10.0
libtpu: 0.0.40
codegen_flags: <defaults>
</compile_context>

<pallas_src>
import math
import functools

import jax
import jax.numpy as jnp
from jax.experimental import pallas as pl
from jax.experimental.pallas import tpu as pltpu


def _layernorm(x, gamma, beta, eps=1e-5):
    mean = jnp.mean(x, axis=-1, keepdims=True)
    var = jnp.mean((x - mean) ** 2, axis=-1, keepdims=True)   # biased, like torch
    return (x - mean) * jax.lax.rsqrt(var + eps) * gamma + beta


def encoder_layer_kernel(
    xq_ref, xkv_ref, kmask_ref,
    wq_ref, bq_ref, wkv_ref, bkv_ref, wo_ref, bo_ref,
    w1_ref, b1_ref, w2_ref, b2_ref,
    g1_ref, beta1_ref, g2_ref, beta2_ref,
    out_ref,
    k_cache, v_cache, q_scr, ctx_scr,
    *, num_heads: int, d_k: int, s_chunk: int, f_chunk: int,
):
    H = num_heads
    S = xkv_ref.shape[0]
    D = wq_ref.shape[0]
    tq = xq_ref.shape[0]

    # ---- K/V projection + head split: once per batch row (query tile 0 only) ----
    @pl.when(pl.program_id(1) == 0)
    def _build_kv_cache():
        wkv = wkv_ref[...]                      # (D, 2D) bf16
        bkv = bkv_ref[...]                      # (1, 2D) f32
        for r0 in range(0, S, s_chunk):
            xr = xkv_ref[r0:r0 + s_chunk, :]    # (rc, D) bf16
            kv = jnp.dot(xr, wkv, preferred_element_type=jnp.float32) + bkv   # (rc, 2D) f32
            for h in range(H):
                k_cache[h, r0:r0 + s_chunk, :] = (
                    kv[:, h * d_k:(h + 1) * d_k].astype(jnp.bfloat16))
                v_cache[h, r0:r0 + s_chunk, :] = (
                    kv[:, D + h * d_k:D + (h + 1) * d_k].astype(jnp.bfloat16))

    # ---- Q projection (per query tile), scale folded in, split into head-major scratch ----
    xq = xq_ref[...]                            # (tq, D) f32 : also the residual
    q = jnp.dot(xq.astype(jnp.bfloat16), wq_ref[...],
                preferred_element_type=jnp.float32) + bq_ref[...]
    q = q * jnp.float32(1.0 / math.sqrt(d_k))
    for h in range(H):
        q_scr[h] = q[:, h * d_k:(h + 1) * d_k].astype(jnp.bfloat16)
    q3 = q_scr[...]                             # (H, tq, d_k) bf16

    # additive key mask (-1e9 matches torch masked_fill when any key is valid)
    neg = jnp.where(kmask_ref[...] == 0.0, jnp.float32(-1e9), jnp.float32(0.0))  # (1, S)

    # ---- key-chunked online softmax over the cached K/V -------------------------
    m = jnp.full((H, tq, 1), -jnp.inf, jnp.float32)
    l = jnp.zeros((H, tq, 1), jnp.float32)
    acc = jnp.zeros((H, tq, d_k), jnp.float32)
    for k0 in range(0, S, s_chunk):
        kb = k_cache[:, k0:k0 + s_chunk, :]     # (H, kc, d_k) bf16
        vb = v_cache[:, k0:k0 + s_chunk, :]
        s = jnp.einsum('hqd,hkd->hqk', q3, kb,
                       preferred_element_type=jnp.float32)          # (H, tq, kc) f32
        s = s + neg[:, k0:k0 + s_chunk]
        m_new = jnp.maximum(m, jnp.max(s, axis=-1, keepdims=True))
        alpha = jnp.exp(m - m_new)
        p = jnp.exp(s - m_new)
        l = alpha * l + jnp.sum(p, axis=-1, keepdims=True)
        acc = alpha * acc + jnp.einsum('hqk,hkd->hqd', p.astype(jnp.bfloat16), vb,
                                       preferred_element_type=jnp.float32)
        m = m_new

    ctx = acc / l                               # exact f32 division (torch parity)

    # ---- combine heads into (tq, D) and do ONE full-depth output projection -----
    for h in range(H):
        ctx_scr[:, h * d_k:(h + 1) * d_k] = ctx[h].astype(jnp.bfloat16)
    attn_out = jnp.dot(ctx_scr[...], wo_ref[...],
                       preferred_element_type=jnp.float32) + bo_ref[...]

    # ---- residual + LayerNorm 1 (f32) -------------------------------------------
    h1 = _layernorm(xq + attn_out, g1_ref[...], beta1_ref[...])

    # ---- FeedForward, chunked over d_ff (<= 4 chunks); ReLU fused per chunk ------
    h1_bf = h1.astype(jnp.bfloat16)
    F = w1_ref.shape[1]
    ff = jnp.zeros((tq, D), jnp.float32)
    for c0 in range(0, F, f_chunk):
        a = jnp.dot(h1_bf, w1_ref[:, c0:c0 + f_chunk],
                    preferred_element_type=jnp.float32) + b1_ref[:, c0:c0 + f_chunk]
        a = jnp.maximum(a, 0.0).astype(jnp.bfloat16)
        ff = ff + jnp.dot(a, w2_ref[c0:c0 + f_chunk, :],
                          preferred_element_type=jnp.float32)
    ff = ff + b2_ref[...]

    # ---- residual + LayerNorm 2 ---------------------------------------------------
    out_ref[...] = _layernorm(h1 + ff, g2_ref[...], beta2_ref[...]).astype(out_ref.dtype)


def _pick_tile(n, cap, align=1):
    """Largest divisor of n that is <= cap (and a multiple of `align`); n itself if n <= cap."""
    if n <= cap:
        return n
    for t in range(cap, 0, -1):
        if n % t == 0 and t % align == 0:
            return t
    return n   # no aligned divisor: fall back to full dim (rare; see TODO on padding)


def _vmem_cap_bytes():
    try:
        cap = getattr(pltpu.get_tpu_info(), "vmem_capacity_bytes", 64 << 20)
    except Exception:
        cap = 64 << 20
    return min(int(cap * 3 // 4), 100 << 20)     # leave compiler headroom; <=48MiB on v7x


def encoder_layer(x, key_valid, params, *, num_heads,
                  tq_max=256, s_chunk_max=512, f_chunk_max=512):
    """x: (B, S, D) f32, key_valid: (B, S) with 1 = keep, 0 = masked key (padding mask)."""
    B, S, D = x.shape
    assert D % num_heads == 0
    d_k = D // num_heads
    F = params["w1"].shape[1]

    # query tile must be a multiple of 8 unless it equals S (BlockSpec (8,128) rule)
    tq = _pick_tile(S, tq_max, align=8)
    n_q = S // tq
    # key/row chunk: <= 8 chunks; FFN chunk: <= 4 chunks
    s_chunk = _pick_tile(S, max(s_chunk_max, -(-S // 8)))
    f_chunk = _pick_tile(F, max(f_chunk_max, -(-F // 4)))

    bf = lambda a: a.astype(jnp.bfloat16)
    wq = bf(params["wq"])
    wkv = bf(jnp.concatenate([params["wk"], params["wv"]], axis=1))      # (D, 2D)
    bkv = jnp.concatenate([params["bk"], params["bv"]], axis=1)          # (1, 2D) f32
    wo = bf(params["wo"])                                                # keep original (D, D)
    w1, w2 = bf(params["w1"]), bf(params["w2"])

    x_kv = bf(x)                                                         # bf16 K/V-path input
    kmask = key_valid.astype(jnp.float32).reshape(B, 1, S)

    const = lambda shape: pl.BlockSpec(shape, lambda b, qi: (0,) * len(shape),
                                       pipeline_mode=pl.Buffered(1))     # single-buffered consts
    in_specs = [
        pl.BlockSpec((None, tq, D), lambda b, qi: (b, qi, 0)),   # x (f32): query rows / residual
        pl.BlockSpec((None, S, D), lambda b, qi: (b, 0, 0)),     # x (bf16): full sequence for K/V
        pl.BlockSpec((None, 1, S), lambda b, qi: (b, 0, 0)),     # key-validity mask
        const((D, D)), const((1, D)),           # Wq, bq
        const((D, 2 * D)), const((1, 2 * D)),   # W[k|v] fused, b[k|v]
        const((D, D)), const((1, D)),           # Wo, bo
        const((D, F)), const((1, F)),           # fc1
        const((F, D)), const((1, D)),           # fc2
        const((1, D)), const((1, D)),           # norm1 gamma / beta
        const((1, D)), const((1, D)),           # norm2 gamma / beta
    ]
    out_spec = pl.BlockSpec((None, tq, D), lambda b, qi: (b, qi, 0))

    scratch_shapes = [
        pltpu.VMEM((num_heads, S, d_k), jnp.bfloat16),    # K cache (per batch row)
        pltpu.VMEM((num_heads, S, d_k), jnp.bfloat16),    # V cache
        pltpu.VMEM((num_heads, tq, d_k), jnp.bfloat16),   # head-split Q
        pltpu.VMEM((tq, D), jnp.bfloat16),                # combined-heads context
    ]

    # ---- VMEM budget for the chosen tiles (single-buffered weights, bf16 K/V cache) ----
    est = 2 * (4 * D * D + 2 * D * F)                     # bf16 weights, 1 buffer each
    est += 4 * (9 * D + F)                                # f32 biases + LN params
    est += 2 * (8 * tq * D)                               # xq + out blocks (f32, 2 buffers)
    est += 2 * (2 * S * D) + 2 * (4 * S)                  # xkv (bf16) + kmask blocks
    est += 4 * S * D + 2 * num_heads * tq * d_k + 2 * tq * D   # scratch
    est += 4 * (2 * s_chunk * D                           # K/V projection chunk (f32)
                + 3 * num_heads * tq * s_chunk            # scores / probs
                + 2 * num_heads * tq * d_k                # acc / ctx
                + 8 * tq * D                              # q, h1, ff, residuals
                + 2 * tq * f_chunk)                       # FFN chunk activations
    vmem_limit = int(min(max(est + (8 << 20), 32 << 20), _vmem_cap_bytes()))

    kernel = functools.partial(encoder_layer_kernel, num_heads=num_heads,
                               d_k=d_k, s_chunk=s_chunk, f_chunk=f_chunk)
    return pl.pallas_call(
        kernel,
        out_shape=jax.ShapeDtypeStruct((B, S, D), jnp.float32),
        grid_spec=pltpu.PrefetchScalarGridSpec(
            num_scalar_prefetch=0,
            grid=(B, n_q),
            in_specs=in_specs,
            out_specs=out_spec,
            scratch_shapes=scratch_shapes,
        ),
        compiler_params=pltpu.CompilerParams(
            # qi must be "arbitrary": the K/V cache is built at qi == 0 and reused for qi > 0.
            dimension_semantics=("parallel", "arbitrary"),
            vmem_limit_bytes=vmem_limit,
        ),
    )(
        x, x_kv, kmask,
        wq, params["bq"], wkv, bkv, wo, params["bo"],
        w1, params["b1"], w2, params["b2"],
        params["g1"], params["beta1"], params["g2"], params["beta2"],
    )


def init_params(key, d_model, d_ff):
    keys = jax.random.split(key, 12)
    s_lin = 1.0 / math.sqrt(d_model)
    s_ff = 1.0 / math.sqrt(d_ff)
    p = {}
    # attention projections, stored pre-transposed as (in, out)
    for i, name in enumerate(["q", "k", "v", "o"]):
        p[f"w{name}"] = jax.random.uniform(keys[i], (d_model, d_model),
                                           jnp.float32, -s_lin, s_lin)
        p[f"b{name}"] = jax.random.uniform(keys[i + 4], (1, d_model),
                                           jnp.float32, -s_lin, s_lin)
    # feed-forward
    p["w1"] = jax.random.uniform(keys[8], (d_model, d_ff), jnp.float32, -s_lin, s_lin)
    p["b1"] = jax.random.uniform(keys[9], (1, d_ff), jnp.float32, -s_lin, s_lin)
    p["w2"] = jax.random.uniform(keys[10], (d_ff, d_model), jnp.float32, -s_ff, s_ff)
    p["b2"] = jax.random.uniform(keys[11], (1, d_model), jnp.float32, -s_ff, s_ff)
    # layer norms (torch default init)
    p["g1"] = jnp.ones((1, d_model), jnp.float32)
    p["beta1"] = jnp.zeros((1, d_model), jnp.float32)
    p["g2"] = jnp.ones((1, d_model), jnp.float32)
    p["beta2"] = jnp.zeros((1, d_model), jnp.float32)
    return p


def reference_encoder_layer(x, key_valid, params, *, num_heads):
    """Pure-JAX f32 reference matching the PyTorch EncoderLayer forward (eval mode)."""
    B, S, D = x.shape
    d_k = D // num_heads
    q = x @ params["wq"] + params["bq"]
    k = x @ params["wk"] + params["bk"]
    v = x @ params["wv"] + params["bv"]
    split = lambda t: t.reshape(B, S, num_heads, d_k).transpose(0, 2, 1, 3)
    qh, kh, vh = split(q), split(k), split(v)
    scores = (qh @ kh.transpose(0, 1, 3, 2)) / math.sqrt(d_k)
    mask = key_valid[:, None, None, :]
    scores = jnp.where(mask == 0, -1e9, scores)
    probs = jax.nn.softmax(scores, axis=-1)
    ctx = (probs @ vh).transpose(0, 2, 1, 3).reshape(B, S, D)
    attn = ctx @ params["wo"] + params["bo"]

    def ln(t, g, b):
        mu = t.mean(-1, keepdims=True)
        var = ((t - mu) ** 2).mean(-1, keepdims=True)
        return (t - mu) * jax.lax.rsqrt(var + 1e-5) * g + b

    h1 = ln(x + attn, params["g1"], params["beta1"])
    ff = jnp.maximum(h1 @ params["w1"] + params["b1"], 0.0) @ params["w2"] + params["b2"]
    return ln(h1 + ff, params["g2"], params["beta2"])


if __name__ == "__main__":
    B, S, D, H, F = 2, 8, 32, 4, 64   # batch, seq, d_model, heads, d_ff
    key = jax.random.PRNGKey(0)
    kx, kp = jax.random.split(key)

    x = jax.random.normal(kx, (B, S, D), jnp.float32)
    # padding-style mask: last 2 key positions of batch 1 are masked out
    key_valid = jnp.ones((B, S), jnp.float32).at[1, S - 2:].set(0.0)

    params = init_params(kp, D, F)

    out = encoder_layer(x, key_valid, params, num_heads=H)
    jax.block_until_ready(out)
    assert out.shape == (B, S, D)

    ref = reference_encoder_layer(x, key_valid, params, num_heads=H)
    assert jnp.allclose(out, ref, atol=1e-1, rtol=1e-1), float(jnp.max(jnp.abs(out - ref)))
    print("KERNEL_OK")
</pallas_src>

<mosaic_0001>
module attributes {stable_mosaic.version = 11 : i64} {
  func.func @encoder_layer_kernel(%arg0: i32, %arg1: i32, %arg2: memref<1x8x32xf32, #tpu.memory_space<vmem>>, %arg3: memref<1x8x32xbf16, #tpu.memory_space<vmem>>, %arg4: memref<1x1x8xf32, #tpu.memory_space<vmem>>, %arg5: memref<32x32xbf16, #tpu.memory_space<vmem>>, %arg6: memref<1x32xf32, #tpu.memory_space<vmem>>, %arg7: memref<32x64xbf16, #tpu.memory_space<vmem>>, %arg8: memref<1x64xf32, #tpu.memory_space<vmem>>, %arg9: memref<32x32xbf16, #tpu.memory_space<vmem>>, %arg10: memref<1x32xf32, #tpu.memory_space<vmem>>, %arg11: memref<32x64xbf16, #tpu.memory_space<vmem>>, %arg12: memref<1x64xf32, #tpu.memory_space<vmem>>, %arg13: memref<64x32xbf16, #tpu.memory_space<vmem>>, %arg14: memref<1x32xf32, #tpu.memory_space<vmem>>, %arg15: memref<1x32xf32, #tpu.memory_space<vmem>>, %arg16: memref<1x32xf32, #tpu.memory_space<vmem>>, %arg17: memref<1x32xf32, #tpu.memory_space<vmem>>, %arg18: memref<1x32xf32, #tpu.memory_space<vmem>>, %arg19: memref<1x8x32xf32, #tpu.memory_space<vmem>>, %arg20: memref<4x8x8xbf16, #tpu.memory_space<vmem>>, %arg21: memref<4x8x8xbf16, #tpu.memory_space<vmem>>, %arg22: memref<4x8x8xbf16, #tpu.memory_space<vmem>>, %arg23: memref<8x32xbf16, #tpu.memory_space<vmem>>) attributes {dimension_semantics = [#tpu.dimension_semantics<parallel>, #tpu.dimension_semantics<arbitrary>], iteration_bounds = array<i64: 2, 1>, scalar_prefetch = 0 : i64, scratch_operands = 4 : i64, tpu.core_type = #tpu.core_type<tc>, window_params = [{transform_indices = @transform_0, window_bounds = array<i64: 1, 8, 32>}, {transform_indices = @transform_1, window_bounds = array<i64: 1, 8, 32>}, {transform_indices = @transform_2, window_bounds = array<i64: 1, 1, 8>}, {pipeline_mode = #tpu.pipeline_mode<synchronous>, transform_indices = @transform_3, window_bounds = array<i64: 32, 32>}, {pipeline_mode = #tpu.pipeline_mode<synchronous>, transform_indices = @transform_4, window_bounds = array<i64: 1, 32>}, {pipeline_mode = #tpu.pipeline_mode<synchronous>, transform_indices = @transform_5, window_bounds = array<i64: 32, 64>}, {pipeline_mode = #tpu.pipeline_mode<synchronous>, transform_indices = @transform_6, window_bounds = array<i64: 1, 64>}, {pipeline_mode = #tpu.pipeline_mode<synchronous>, transform_indices = @transform_7, window_bounds = array<i64: 32, 32>}, {pipeline_mode = #tpu.pipeline_mode<synchronous>, transform_indices = @transform_8, window_bounds = array<i64: 1, 32>}, {pipeline_mode = #tpu.pipeline_mode<synchronous>, transform_indices = @transform_9, window_bounds = array<i64: 32, 64>}, {pipeline_mode = #tpu.pipeline_mode<synchronous>, transform_indices = @transform_10, window_bounds = array<i64: 1, 64>}, {pipeline_mode = #tpu.pipeline_mode<synchronous>, transform_indices = @transform_11, window_bounds = array<i64: 64, 32>}, {pipeline_mode = #tpu.pipeline_mode<synchronous>, transform_indices = @transform_12, window_bounds = array<i64: 1, 32>}, {pipeline_mode = #tpu.pipeline_mode<synchronous>, transform_indices = @transform_13, window_bounds = array<i64: 1, 32>}, {pipeline_mode = #tpu.pipeline_mode<synchronous>, transform_indices = @transform_14, window_bounds = array<i64: 1, 32>}, {pipeline_mode = #tpu.pipeline_mode<synchronous>, transform_indices = @transform_15, window_bounds = array<i64: 1, 32>}, {pipeline_mode = #tpu.pipeline_mode<synchronous>, transform_indices = @transform_16, window_bounds = array<i64: 1, 32>}, {transform_indices = @transform_17, window_bounds = array<i64: 1, 8, 32>}]} {
    %c0_i32 = arith.constant 0 : i32
    %0 = arith.cmpi eq, %arg1, %c0_i32 : i32
    %1 = arith.extui %0 : i1 to i32
    %c0_i32_0 = arith.constant 0 : i32
    %2 = arith.cmpi ne, %1, %c0_i32_0 : i32
    scf.if %2 {
      %c0_84 = arith.constant 0 : index
      %c0_85 = arith.constant 0 : index
      %160 = vector.load %arg7[%c0_84, %c0_85] : memref<32x64xbf16, #tpu.memory_space<vmem>>, vector<32x64xbf16>
      %c0_86 = arith.constant 0 : index
      %c0_87 = arith.constant 0 : index
      %161 = vector.load %arg8[%c0_86, %c0_87] : memref<1x64xf32, #tpu.memory_space<vmem>>, vector<1x64xf32>
      %c0_88 = arith.constant 0 : index
      %c0_89 = arith.constant 0 : index
      %c0_90 = arith.constant 0 : index
      %162 = vector.load %arg3[%c0_88, %c0_89, %c0_90] : memref<1x8x32xbf16, #tpu.memory_space<vmem>>, vector<1x8x32xbf16>
      %163 = vector.shape_cast %162 : vector<1x8x32xbf16> to vector<8x32xbf16>
      %cst_91 = arith.constant dense<0.000000e+00> : vector<8x64xf32>
      %164 = tpu.matmul %163, %160, %cst_91 {dimension_numbers = #tpu.dot_dimension_numbers<[1], [0], [0], [1], [0, 0, 1, 1], [], []>} : vector<8x32xbf16>, vector<32x64xbf16>, vector<8x64xf32> -> vector<8x64xf32>
      %165 = vector.broadcast %161 : vector<1x64xf32> to vector<8x64xf32>
      %166 = arith.addf %164, %165 : vector<8x64xf32>
      %167 = vector.extract_strided_slice %166 {offsets = [0, 0], sizes = [8, 8], strides = [1, 1]} : vector<8x64xf32> to vector<8x8xf32>
      %168 = arith.truncf %167 : vector<8x8xf32> to vector<8x8xbf16>
      %c0_92 = arith.constant 0 : index
      %c0_93 = arith.constant 0 : index
      %c0_94 = arith.constant 0 : index
      %169 = vector.load %arg20[%c0_92, %c0_93, %c0_94] : memref<4x8x8xbf16, #tpu.memory_space<vmem>>, vector<1x8x8xbf16>
      %170 = vector.shape_cast %169 : vector<1x8x8xbf16> to vector<8x8xbf16>
      %171 = vector.shape_cast %168 : vector<8x8xbf16> to vector<1x8x8xbf16>
      tpu.vector_store %arg20[%c0_92, %c0_93, %c0_94], %171 {strides = array<i32>} : memref<4x8x8xbf16, #tpu.memory_space<vmem>>, vector<1x8x8xbf16>,
      %172 = vector.extract_strided_slice %166 {offsets = [0, 32], sizes = [8, 8], strides = [1, 1]} : vector<8x64xf32> to vector<8x8xf32>
      %173 = arith.truncf %172 : vector<8x8xf32> to vector<8x8xbf16>
      %c0_95 = arith.constant 0 : index
      %c0_96 = arith.constant 0 : index
      %c0_97 = arith.constant 0 : index
      %174 = vector.load %arg21[%c0_95, %c0_96, %c0_97] : memref<4x8x8xbf16, #tpu.memory_space<vmem>>, vector<1x8x8xbf16>
      %175 = vector.shape_cast %174 : vector<1x8x8xbf16> to vector<8x8xbf16>
      %176 = vector.shape_cast %173 : vector<8x8xbf16> to vector<1x8x8xbf16>
      tpu.vector_store %arg21[%c0_95, %c0_96, %c0_97], %176 {strides = array<i32>} : memref<4x8x8xbf16, #tpu.memory_space<vmem>>, vector<1x8x8xbf16>,
      %177 = vector.extract_strided_slice %166 {offsets = [0, 8], sizes = [8, 8], strides = [1, 1]} : vector<8x64xf32> to vector<8x8xf32>
      %178 = arith.truncf %177 : vector<8x8xf32> to vector<8x8xbf16>
      %c1_98 = arith.constant 1 : index
      %c0_99 = arith.constant 0 : index
      %c0_100 = arith.constant 0 : index
      %179 = vector.load %arg20[%c1_98, %c0_99, %c0_100] : memref<4x8x8xbf16, #tpu.memory_space<vmem>>, vector<1x8x8xbf16>
      %180 = vector.shape_cast %179 : vector<1x8x8xbf16> to vector<8x8xbf16>
      %181 = vector.shape_cast %178 : vector<8x8xbf16> to vector<1x8x8xbf16>
      tpu.vector_store %arg20[%c1_98, %c0_99, %c0_100], %181 {strides = array<i32>} : memref<4x8x8xbf16, #tpu.memory_space<vmem>>, vector<1x8x8xbf16>,
      %182 = vector.extract_strided_slice %166 {offsets = [0, 40], sizes = [8, 8], strides = [1, 1]} : vector<8x64xf32> to vector<8x8xf32>
      %183 = arith.truncf %182 : vector<8x8xf32> to vector<8x8xbf16>
      %c1_101 = arith.constant 1 : index
      %c0_102 = arith.constant 0 : index
      %c0_103 = arith.constant 0 : index
      %184 = vector.load %arg21[%c1_101, %c0_102, %c0_103] : memref<4x8x8xbf16, #tpu.memory_space<vmem>>, vector<1x8x8xbf16>
      %185 = vector.shape_cast %184 : vector<1x8x8xbf16> to vector<8x8xbf16>
      %186 = vector.shape_cast %183 : vector<8x8xbf16> to vector<1x8x8xbf16>
      tpu.vector_store %arg21[%c1_101, %c0_102, %c0_103], %186 {strides = array<i32>} : memref<4x8x8xbf16, #tpu.memory_space<vmem>>, vector<1x8x8xbf16>,
      %187 = vector.extract_strided_slice %166 {offsets = [0, 16], sizes = [8, 8], strides = [1, 1]} : vector<8x64xf32> to vector<8x8xf32>
      %188 = arith.truncf %187 : vector<8x8xf32> to vector<8x8xbf16>
      %c2_104 = arith.constant 2 : index
      %c0_105 = arith.constant 0 : index
      %c0_106 = arith.constant 0 : index
      %189 = vector.load %arg20[%c2_104, %c0_105, %c0_106] : memref<4x8x8xbf16, #tpu.memory_space<vmem>>, vector<1x8x8xbf16>
      %190 = vector.shape_cast %189 : vector<1x8x8xbf16> to vector<8x8xbf16>
      %191 = vector.shape_cast %188 : vector<8x8xbf16> to vector<1x8x8xbf16>
      tpu.vector_store %arg20[%c2_104, %c0_105, %c0_106], %191 {strides = array<i32>} : memref<4x8x8xbf16, #tpu.memory_space<vmem>>, vector<1x8x8xbf16>,
      %192 = vector.extract_strided_slice %166 {offsets = [0, 48], sizes = [8, 8], strides = [1, 1]} : vector<8x64xf32> to vector<8x8xf32>
      %193 = arith.truncf %192 : vector<8x8xf32> to vector<8x8xbf16>
      %c2_107 = arith.constant 2 : index
      %c0_108 = arith.constant 0 : index
      %c0_109 = arith.constant 0 : index
      %194 = vector.load %arg21[%c2_107, %c0_108, %c0_109] : memref<4x8x8xbf16, #tpu.memory_space<vmem>>, vector<1x8x8xbf16>
      %195 = vector.shape_cast %194 : vector<1x8x8xbf16> to vector<8x8xbf16>
      %196 = vector.shape_cast %193 : vector<8x8xbf16> to vector<1x8x8xbf16>
      tpu.vector_store %arg21[%c2_107, %c0_108, %c0_109], %196 {strides = array<i32>} : memref<4x8x8xbf16, #tpu.memory_space<vmem>>, vector<1x8x8xbf16>,
      %197 = vector.extract_strided_slice %166 {offsets = [0, 24], sizes = [8, 8], strides = [1, 1]} : vector<8x64xf32> to vector<8x8xf32>
      %198 = arith.truncf %197 : vector<8x8xf32> to vector<8x8xbf16>
      %c3_110 = arith.constant 3 : index
      %c0_111 = arith.constant 0 : index
      %c0_112 = arith.constant 0 : index
      %199 = vector.load %arg20[%c3_110, %c0_111, %c0_112] : memref<4x8x8xbf16, #tpu.memory_space<vmem>>, vector<1x8x8xbf16>
      %200 = vector.shape_cast %199 : vector<1x8x8xbf16> to vector<8x8xbf16>
      %201 = vector.shape_cast %198 : vector<8x8xbf16> to vector<1x8x8xbf16>
      tpu.vector_store %arg20[%c3_110, %c0_111, %c0_112], %201 {strides = array<i32>} : memref<4x8x8xbf16, #tpu.memory_space<vmem>>, vector<1x8x8xbf16>,
      %202 = vector.extract_strided_slice %166 {offsets = [0, 56], sizes = [8, 8], strides = [1, 1]} : vector<8x64xf32> to vector<8x8xf32>
      %203 = arith.truncf %202 : vector<8x8xf32> to vector<8x8xbf16>
      %c3_113 = arith.constant 3 : index
      %c0_114 = arith.constant 0 : index
      %c0_115 = arith.constant 0 : index
      %204 = vector.load %arg21[%c3_113, %c0_114, %c0_115] : memref<4x8x8xbf16, #tpu.memory_space<vmem>>, vector<1x8x8xbf16>
      %205 = vector.shape_cast %204 : vector<1x8x8xbf16> to vector<8x8xbf16>
      %206 = vector.shape_cast %203 : vector<8x8xbf16> to vector<1x8x8xbf16>
      tpu.vector_store %arg21[%c3_113, %c0_114, %c0_115], %206 {strides = array<i32>} : memref<4x8x8xbf16, #tpu.memory_space<vmem>>, vector<1x8x8xbf16>,
    } else {
    }
    %c0 = arith.constant 0 : index
    %c0_1 = arith.constant 0 : index
    %c0_2 = arith.constant 0 : index
    %3 = vector.load %arg2[%c0, %c0_1, %c0_2] : memref<1x8x32xf32, #tpu.memory_space<vmem>>, vector<1x8x32xf32>
    %4 = vector.shape_cast %3 : vector<1x8x32xf32> to vector<8x32xf32>
    %5 = arith.truncf %4 : vector<8x32xf32> to vector<8x32xbf16>
    %c0_3 = arith.constant 0 : index
    %c0_4 = arith.constant 0 : index
    %6 = vector.load %arg5[%c0_3, %c0_4] : memref<32x32xbf16, #tpu.memory_space<vmem>>, vector<32x32xbf16>
    %cst = arith.constant dense<0.000000e+00> : vector<8x32xf32>
    %7 = tpu.matmul %5, %6, %cst {dimension_numbers = #tpu.dot_dimension_numbers<[1], [0], [0], [1], [0, 0, 1, 1], [], []>} : vector<8x32xbf16>, vector<32x32xbf16>, vector<8x32xf32> -> vector<8x32xf32>
    %c0_5 = arith.constant 0 : index
    %c0_6 = arith.constant 0 : index
    %8 = vector.load %arg6[%c0_5, %c0_6] : memref<1x32xf32, #tpu.memory_space<vmem>>, vector<1x32xf32>
    %9 = vector.broadcast %8 : vector<1x32xf32> to vector<8x32xf32>
    %10 = arith.addf %7, %9 : vector<8x32xf32>
    %cst_7 = arith.constant 0.353553385 : f32
    %11 = vector.broadcast %cst_7 : f32 to vector<8x32xf32>
    %12 = arith.mulf %10, %11 : vector<8x32xf32>
    %13 = vector.extract_strided_slice %12 {offsets = [0, 0], sizes = [8, 8], strides = [1, 1]} : vector<8x32xf32> to vector<8x8xf32>
    %14 = arith.truncf %13 : vector<8x8xf32> to vector<8x8xbf16>
    %c0_8 = arith.constant 0 : index
    %c0_9 = arith.constant 0 : index
    %c0_10 = arith.constant 0 : index
    %15 = vector.load %arg22[%c0_8, %c0_9, %c0_10] : memref<4x8x8xbf16, #tpu.memory_space<vmem>>, vector<1x8x8xbf16>
    %16 = vector.shape_cast %15 : vector<1x8x8xbf16> to vector<8x8xbf16>
    %17 = vector.shape_cast %14 : vector<8x8xbf16> to vector<1x8x8xbf16>
    tpu.vector_store %arg22[%c0_8, %c0_9, %c0_10], %17 {strides = array<i32>} : memref<4x8x8xbf16, #tpu.memory_space<vmem>>, vector<1x8x8xbf16>,
    %18 = vector.extract_strided_slice %12 {offsets = [0, 8], sizes = [8, 8], strides = [1, 1]} : vector<8x32xf32> to vector<8x8xf32>
    %19 = arith.truncf %18 : vector<8x8xf32> to vector<8x8xbf16>
    %c1 = arith.constant 1 : index
    %c0_11 = arith.constant 0 : index
    %c0_12 = arith.constant 0 : index
    %20 = vector.load %arg22[%c1, %c0_11, %c0_12] : memref<4x8x8xbf16, #tpu.memory_space<vmem>>, vector<1x8x8xbf16>
    %21 = vector.shape_cast %20 : vector<1x8x8xbf16> to vector<8x8xbf16>
    %22 = vector.shape_cast %19 : vector<8x8xbf16> to vector<1x8x8xbf16>
    tpu.vector_store %arg22[%c1, %c0_11, %c0_12], %22 {strides = array<i32>} : memref<4x8x8xbf16, #tpu.memory_space<vmem>>, vector<1x8x8xbf16>,
    %23 = vector.extract_strided_slice %12 {offsets = [0, 16], sizes = [8, 8], strides = [1, 1]} : vector<8x32xf32> to vector<8x8xf32>
    %24 = arith.truncf %23 : vector<8x8xf32> to vector<8x8xbf16>
    %c2 = arith.constant 2 : index
    %c0_13 = arith.constant 0 : index
    %c0_14 = arith.constant 0 : index
    %25 = vector.load %arg22[%c2, %c0_13, %c0_14] : memref<4x8x8xbf16, #tpu.memory_space<vmem>>, vector<1x8x8xbf16>
    %26 = vector.shape_cast %25 : vector<1x8x8xbf16> to vector<8x8xbf16>
    %27 = vector.shape_cast %24 : vector<8x8xbf16> to vector<1x8x8xbf16>
    tpu.vector_store %arg22[%c2, %c0_13, %c0_14], %27 {strides = array<i32>} : memref<4x8x8xbf16, #tpu.memory_space<vmem>>, vector<1x8x8xbf16>,
    %28 = vector.extract_strided_slice %12 {offsets = [0, 24], sizes = [8, 8], strides = [1, 1]} : vector<8x32xf32> to vector<8x8xf32>
    %29 = arith.truncf %28 : vector<8x8xf32> to vector<8x8xbf16>
    %c3 = arith.constant 3 : index
    %c0_15 = arith.constant 0 : index
    %c0_16 = arith.constant 0 : index
    %30 = vector.load %arg22[%c3, %c0_15, %c0_16] : memref<4x8x8xbf16, #tpu.memory_space<vmem>>, vector<1x8x8xbf16>
    %31 = vector.shape_cast %30 : vector<1x8x8xbf16> to vector<8x8xbf16>
    %32 = vector.shape_cast %29 : vector<8x8xbf16> to vector<1x8x8xbf16>
    tpu.vector_store %arg22[%c3, %c0_15, %c0_16], %32 {strides = array<i32>} : memref<4x8x8xbf16, #tpu.memory_space<vmem>>, vector<1x8x8xbf16>,
    %c0_17 = arith.constant 0 : index
    %c0_18 = arith.constant 0 : index
    %c0_19 = arith.constant 0 : index
    %33 = vector.load %arg22[%c0_17, %c0_18, %c0_19] : memref<4x8x8xbf16, #tpu.memory_space<vmem>>, vector<4x8x8xbf16>
    %c0_20 = arith.constant 0 : index
    %c0_21 = arith.constant 0 : index
    %c0_22 = arith.constant 0 : index
    %34 = vector.load %arg4[%c0_20, %c0_21, %c0_22] : memref<1x1x8xf32, #tpu.memory_space<vmem>>, vector<1x1x8xf32>
    %35 = vector.shape_cast %34 : vector<1x1x8xf32> to vector<1x8xf32>
    %cst_23 = arith.constant 0.000000e+00 : f32
    %36 = vector.broadcast %cst_23 : f32 to vector<1x8xf32>
    %37 = arith.cmpf oeq, %35, %36 : vector<1x8xf32>
    %cst_24 = arith.constant -1.000000e+09 : f32
    %cst_25 = arith.constant 0.000000e+00 : f32
    %38 = vector.broadcast %cst_24 : f32 to vector<1x8xf32>
    %39 = vector.broadcast %cst_25 : f32 to vector<1x8xf32>
    %40 = arith.select %37, %38, %39 : vector<1x8xi1>, vector<1x8xf32>
    %cst_26 = arith.constant 0xFF800000 : f32
    %41 = vector.broadcast %cst_26 : f32 to vector<4x8x1xf32>
    %cst_27 = arith.constant 0.000000e+00 : f32
    %42 = vector.broadcast %cst_27 : f32 to vector<4x8x1xf32>
    %cst_28 = arith.constant 0.000000e+00 : f32
    %43 = vector.broadcast %cst_28 : f32 to vector<4x8x8xf32>
    %c0_29 = arith.constant 0 : index
    %c0_30 = arith.constant 0 : index
    %c0_31 = arith.constant 0 : index
    %44 = vector.load %arg20[%c0_29, %c0_30, %c0_31] : memref<4x8x8xbf16, #tpu.memory_space<vmem>>, vector<4x8x8xbf16>
    %c0_32 = arith.constant 0 : index
    %c0_33 = arith.constant 0 : index
    %c0_34 = arith.constant 0 : index
    %45 = vector.load %arg21[%c0_32, %c0_33, %c0_34] : memref<4x8x8xbf16, #tpu.memory_space<vmem>>, vector<4x8x8xbf16>
    "tpu.trace_start"() <{level = 10 : i32, message = "hqd,hkd->hqk"}> : () -> ()
    %cst_35 = arith.constant dense<0.000000e+00> : vector<4x8x8xf32>
    %46 = tpu.matmul %33, %44, %cst_35 {dimension_numbers = #tpu.dot_dimension_numbers<[2], [2], [1], [1], [0, 0, 0, 1, 1, 1], [0], [0]>} : vector<4x8x8xbf16>, vector<4x8x8xbf16>, vector<4x8x8xf32> -> vector<4x8x8xf32>
    "tpu.trace_stop"() : () -> ()
    %47 = vector.shape_cast %40 : vector<1x8xf32> to vector<1x1x8xf32>
    %48 = vector.broadcast %47 : vector<1x1x8xf32> to vector<4x8x8xf32>
    %49 = arith.addf %46, %48 : vector<4x8x8xf32>
    %cst_36 = arith.constant dense<0xFF800000> : vector<4x8xf32>
    %50 = vector.multi_reduction <maximumf>, %49, %cst_36 [2] : vector<4x8x8xf32> to vector<4x8xf32>
    %51 = vector.shape_cast %50 : vector<4x8xf32> to vector<4x8x1xf32>
    %52 = arith.maximumf %41, %51 : vector<4x8x1xf32>
    %53 = arith.subf %41, %52 : vector<4x8x1xf32>
    %54 = math.exp %53 : vector<4x8x1xf32>
    %55 = vector.broadcast %52 : vector<4x8x1xf32> to vector<4x8x8xf32>
    %56 = arith.subf %49, %55 : vector<4x8x8xf32>
    %57 = math.exp %56 : vector<4x8x8xf32>
    %58 = arith.mulf %54, %42 : vector<4x8x1xf32>
    %cst_37 = arith.constant dense<0.000000e+00> : vector<4x8xf32>
    %59 = vector.multi_reduction <add>, %57, %cst_37 [2] : vector<4x8x8xf32> to vector<4x8xf32>
    %60 = vector.shape_cast %59 : vector<4x8xf32> to vector<4x8x1xf32>
    %61 = arith.addf %58, %60 : vector<4x8x1xf32>
    %62 = vector.broadcast %54 : vector<4x8x1xf32> to vector<4x8x8xf32>
    %63 = arith.mulf %62, %43 : vector<4x8x8xf32>
    %64 = arith.truncf %57 : vector<4x8x8xf32> to vector<4x8x8xbf16>
    "tpu.trace_start"() <{level = 10 : i32, message = "hqk,hkd->hqd"}> : () -> ()
    %cst_38 = arith.constant dense<0.000000e+00> : vector<4x8x8xf32>
    %65 = tpu.matmul %64, %45, %cst_38 {dimension_numbers = #tpu.dot_dimension_numbers<[2], [1], [1], [2], [0, 0, 0, 1, 1, 2], [0], [0]>} : vector<4x8x8xbf16>, vector<4x8x8xbf16>, vector<4x8x8xf32> -> vector<4x8x8xf32>
    "tpu.trace_stop"() : () -> ()
    %66 = arith.addf %63, %65 : vector<4x8x8xf32>
    %67 = vector.broadcast %61 : vector<4x8x1xf32> to vector<4x8x8xf32>
    %68 = arith.divf %66, %67 : vector<4x8x8xf32>
    %69 = vector.extract_strided_slice %68 {offsets = [0, 0, 0], sizes = [1, 8, 8], strides = [1, 1, 1]} : vector<4x8x8xf32> to vector<1x8x8xf32>
    %70 = vector.shape_cast %69 : vector<1x8x8xf32> to vector<8x8xf32>
    %71 = arith.truncf %70 : vector<8x8xf32> to vector<8x8xbf16>
    %c0_39 = arith.constant 0 : index
    %c0_40 = arith.constant 0 : index
    %72 = vector.load %arg23[%c0_39, %c0_40] : memref<8x32xbf16, #tpu.memory_space<vmem>>, vector<8x8xbf16>
    tpu.vector_store %arg23[%c0_39, %c0_40], %71 {strides = array<i32>} : memref<8x32xbf16, #tpu.memory_space<vmem>>, vector<8x8xbf16>,
    %73 = vector.extract_strided_slice %68 {offsets = [1, 0, 0], sizes = [1, 8, 8], strides = [1, 1, 1]} : vector<4x8x8xf32> to vector<1x8x8xf32>
    %74 = vector.shape_cast %73 : vector<1x8x8xf32> to vector<8x8xf32>
    %75 = arith.truncf %74 : vector<8x8xf32> to vector<8x8xbf16>
    %c0_41 = arith.constant 0 : index
    %c8 = arith.constant 8 : index
    %76 = vector.load %arg23[%c0_41, %c8] : memref<8x32xbf16, #tpu.memory_space<vmem>>, vector<8x8xbf16>
    tpu.vector_store %arg23[%c0_41, %c8], %75 {strides = array<i32>} : memref<8x32xbf16, #tpu.memory_space<vmem>>, vector<8x8xbf16>,
    %77 = vector.extract_strided_slice %68 {offsets = [2, 0, 0], sizes = [1, 8, 8], strides = [1, 1, 1]} : vector<4x8x8xf32> to vector<1x8x8xf32>
    %78 = vector.shape_cast %77 : vector<1x8x8xf32> to vector<8x8xf32>
    %79 = arith.truncf %78 : vector<8x8xf32> to vector<8x8xbf16>
    %c0_42 = arith.constant 0 : index
    %c16 = arith.constant 16 : index
    %80 = vector.load %arg23[%c0_42, %c16] : memref<8x32xbf16, #tpu.memory_space<vmem>>, vector<8x8xbf16>
    tpu.vector_store %arg23[%c0_42, %c16], %79 {strides = array<i32>} : memref<8x32xbf16, #tpu.memory_space<vmem>>, vector<8x8xbf16>,
    %81 = vector.extract_strided_slice %68 {offsets = [3, 0, 0], sizes = [1, 8, 8], strides = [1, 1, 1]} : vector<4x8x8xf32> to vector<1x8x8xf32>
    %82 = vector.shape_cast %81 : vector<1x8x8xf32> to vector<8x8xf32>
    %83 = arith.truncf %82 : vector<8x8xf32> to vector<8x8xbf16>
    %c0_43 = arith.constant 0 : index
    %c24 = arith.constant 24 : index
    %84 = vector.load %arg23[%c0_43, %c24] : memref<8x32xbf16, #tpu.memory_space<vmem>>, vector<8x8xbf16>
    tpu.vector_store %arg23[%c0_43, %c24], %83 {strides = array<i32>} : memref<8x32xbf16, #tpu.memory_space<vmem>>, vector<8x8xbf16>,
    %c0_44 = arith.constant 0 : index
    %c0_45 = arith.constant 0 : index
    %85 = vector.load %arg23[%c0_44, %c0_45] : memref<8x32xbf16, #tpu.memory_space<vmem>>, vector<8x32xbf16>
    %c0_46 = arith.constant 0 : index
    %c0_47 = arith.constant 0 : index
    %86 = vector.load %arg9[%c0_46, %c0_47] : memref<32x32xbf16, #tpu.memory_space<vmem>>, vector<32x32xbf16>
    %cst_48 = arith.constant dense<0.000000e+00> : vector<8x32xf32>
    %87 = tpu.matmul %85, %86, %cst_48 {dimension_numbers = #tpu.dot_dimension_numbers<[1], [0], [0], [1], [0, 0, 1, 1], [], []>} : vector<8x32xbf16>, vector<32x32xbf16>, vector<8x32xf32> -> vector<8x32xf32>
    %c0_49 = arith.constant 0 : index
    %c0_50 = arith.constant 0 : index
    %88 = vector.load %arg10[%c0_49, %c0_50] : memref<1x32xf32, #tpu.memory_space<vmem>>, vector<1x32xf32>
    %89 = vector.broadcast %88 : vector<1x32xf32> to vector<8x32xf32>
    %90 = arith.addf %87, %89 : vector<8x32xf32>
    %91 = arith.addf %4, %90 : vector<8x32xf32>
    %c0_51 = arith.constant 0 : index
    %c0_52 = arith.constant 0 : index
    %92 = vector.load %arg15[%c0_51, %c0_52] : memref<1x32xf32, #tpu.memory_space<vmem>>, vector<1x32xf32>
    %c0_53 = arith.constant 0 : index
    %c0_54 = arith.constant 0 : index
    %93 = vector.load %arg16[%c0_53, %c0_54] : memref<1x32xf32, #tpu.memory_space<vmem>>, vector<1x32xf32>
    %cst_55 = arith.constant dense<0.000000e+00> : vector<8xf32>
    %94 = vector.multi_reduction <add>, %91, %cst_55 [1] : vector<8x32xf32> to vector<8xf32>
    %95 = vector.shape_cast %94 : vector<8xf32> to vector<8x1xf32>
    %cst_56 = arith.constant 3.200000e+01 : f32
    %96 = vector.broadcast %cst_56 : f32 to vector<8x1xf32>
    %97 = arith.divf %95, %96 : vector<8x1xf32>
    %98 = vector.broadcast %97 : vector<8x1xf32> to vector<8x32xf32>
    %99 = arith.subf %91, %98 : vector<8x32xf32>
    %100 = arith.mulf %99, %99 : vector<8x32xf32>
    %cst_57 = arith.constant dense<0.000000e+00> : vector<8xf32>
    %101 = vector.multi_reduction <add>, %100, %cst_57 [1] : vector<8x32xf32> to vector<8xf32>
    %102 = vector.shape_cast %101 : vector<8xf32> to vector<8x1xf32>
    %cst_58 = arith.constant 3.200000e+01 : f32
    %103 = vector.broadcast %cst_58 : f32 to vector<8x1xf32>
    %104 = arith.divf %102, %103 : vector<8x1xf32>
    %105 = vector.broadcast %97 : vector<8x1xf32> to vector<8x32xf32>
    %106 = arith.subf %91, %105 : vector<8x32xf32>
    %cst_59 = arith.constant 9.99999974E-6 : f32
    %107 = vector.broadcast %cst_59 : f32 to vector<8x1xf32>
    %108 = arith.addf %104, %107 : vector<8x1xf32>
    %109 = math.rsqrt %108 : vector<8x1xf32>
    %110 = vector.broadcast %109 : vector<8x1xf32> to vector<8x32xf32>
    %111 = arith.mulf %106, %110 : vector<8x32xf32>
    %112 = vector.broadcast %92 : vector<1x32xf32> to vector<8x32xf32>
    %113 = arith.mulf %111, %112 : vector<8x32xf32>
    %114 = vector.broadcast %93 : vector<1x32xf32> to vector<8x32xf32>
    %115 = arith.addf %113, %114 : vector<8x32xf32>
    %116 = arith.truncf %115 : vector<8x32xf32> to vector<8x32xbf16>
    %cst_60 = arith.constant 0.000000e+00 : f32
    %117 = vector.broadcast %cst_60 : f32 to vector<8x32xf32>
    %c0_61 = arith.constant 0 : index
    %c0_62 = arith.constant 0 : index
    %118 = vector.load %arg11[%c0_61, %c0_62] : memref<32x64xbf16, #tpu.memory_space<vmem>>, vector<32x64xbf16>
    %cst_63 = arith.constant dense<0.000000e+00> : vector<8x64xf32>
    %119 = tpu.matmul %116, %118, %cst_63 {dimension_numbers = #tpu.dot_dimension_numbers<[1], [0], [0], [1], [0, 0, 1, 1], [], []>} : vector<8x32xbf16>, vector<32x64xbf16>, vector<8x64xf32> -> vector<8x64xf32>
    %c0_64 = arith.constant 0 : index
    %c0_65 = arith.constant 0 : index
    %120 = vector.load %arg12[%c0_64, %c0_65] : memref<1x64xf32, #tpu.memory_space<vmem>>, vector<1x64xf32>
    %121 = vector.broadcast %120 : vector<1x64xf32> to vector<8x64xf32>
    %122 = arith.addf %119, %121 : vector<8x64xf32>
    %cst_66 = arith.constant 0.000000e+00 : f32
    %123 = vector.broadcast %cst_66 : f32 to vector<8x64xf32>
    %124 = arith.maximumf %122, %123 : vector<8x64xf32>
    %125 = arith.truncf %124 : vector<8x64xf32> to vector<8x64xbf16>
    %c0_67 = arith.constant 0 : index
    %c0_68 = arith.constant 0 : index
    %126 = vector.load %arg13[%c0_67, %c0_68] : memref<64x32xbf16, #tpu.memory_space<vmem>>, vector<64x32xbf16>
    %cst_69 = arith.constant dense<0.000000e+00> : vector<8x32xf32>
    %127 = tpu.matmul %125, %126, %cst_69 {dimension_numbers = #tpu.dot_dimension_numbers<[1], [0], [0], [1], [0, 0, 1, 1], [], []>} : vector<8x64xbf16>, vector<64x32xbf16>, vector<8x32xf32> -> vector<8x32xf32>
    %128 = arith.addf %117, %127 : vector<8x32xf32>
    %c0_70 = arith.constant 0 : index
    %c0_71 = arith.constant 0 : index
    %129 = vector.load %arg14[%c0_70, %c0_71] : memref<1x32xf32, #tpu.memory_space<vmem>>, vector<1x32xf32>
    %130 = vector.broadcast %129 : vector<1x32xf32> to vector<8x32xf32>
    %131 = arith.addf %128, %130 : vector<8x32xf32>
    %132 = arith.addf %115, %131 : vector<8x32xf32>
    %c0_72 = arith.constant 0 : index
    %c0_73 = arith.constant 0 : index
    %133 = vector.load %arg17[%c0_72, %c0_73] : memref<1x32xf32, #tpu.memory_space<vmem>>, vector<1x32xf32>
    %c0_74 = arith.constant 0 : index
    %c0_75 = arith.constant 0 : index
    %134 = vector.load %arg18[%c0_74, %c0_75] : memref<1x32xf32, #tpu.memory_space<vmem>>, vector<1x32xf32>
    %cst_76 = arith.constant dense<0.000000e+00> : vector<8xf32>
    %135 = vector.multi_reduction <add>, %132, %cst_76 [1] : vector<8x32xf32> to vector<8xf32>
    %136 = vector.shape_cast %135 : vector<8xf32> to vector<8x1xf32>
    %cst_77 = arith.constant 3.200000e+01 : f32
    %137 = vector.broadcast %cst_77 : f32 to vector<8x1xf32>
    %138 = arith.divf %136, %137 : vector<8x1xf32>
    %139 = vector.broadcast %138 : vector<8x1xf32> to vector<8x32xf32>
    %140 = arith.subf %132, %139 : vector<8x32xf32>
    %141 = arith.mulf %140, %140 : vector<8x32xf32>
    %cst_78 = arith.constant dense<0.000000e+00> : vector<8xf32>
    %142 = vector.multi_reduction <add>, %141, %cst_78 [1] : vector<8x32xf32> to vector<8xf32>
    %143 = vector.shape_cast %142 : vector<8xf32> to vector<8x1xf32>
    %cst_79 = arith.constant 3.200000e+01 : f32
    %144 = vector.broadcast %cst_79 : f32 to vector<8x1xf32>
    %145 = arith.divf %143, %144 : vector<8x1xf32>
    %146 = vector.broadcast %138 : vector<8x1xf32> to vector<8x32xf32>
    %147 = arith.subf %132, %146 : vector<8x32xf32>
    %cst_80 = arith.constant 9.99999974E-6 : f32
    %148 = vector.broadcast %cst_80 : f32 to vector<8x1xf32>
    %149 = arith.addf %145, %148 : vector<8x1xf32>
    %150 = math.rsqrt %149 : vector<8x1xf32>
    %151 = vector.broadcast %150 : vector<8x1xf32> to vector<8x32xf32>
    %152 = arith.mulf %147, %151 : vector<8x32xf32>
    %153 = vector.broadcast %133 : vector<1x32xf32> to vector<8x32xf32>
    %154 = arith.mulf %152, %153 : vector<8x32xf32>
    %155 = vector.broadcast %134 : vector<1x32xf32> to vector<8x32xf32>
    %156 = arith.addf %154, %155 : vector<8x32xf32>
    %c0_81 = arith.constant 0 : index
    %c0_82 = arith.constant 0 : index
    %c0_83 = arith.constant 0 : index
    %157 = vector.load %arg19[%c0_81, %c0_82, %c0_83] : memref<1x8x32xf32, #tpu.memory_space<vmem>>, vector<1x8x32xf32>
    %158 = vector.shape_cast %157 : vector<1x8x32xf32> to vector<8x32xf32>
    %159 = vector.shape_cast %156 : vector<8x32xf32> to vector<1x8x32xf32>
    tpu.vector_store %arg19[%c0_81, %c0_82, %c0_83], %159 {strides = array<i32>} : memref<1x8x32xf32, #tpu.memory_space<vmem>>, vector<1x8x32xf32>,
    return
  }
  func.func @transform_0(%arg0: i32, %arg1: i32) -> (i32, i32, i32) {
    %c0_i32 = arith.constant 0 : i32
    %c0_i32_0 = arith.constant 0 : i32
    return %arg0, %arg1, %c0_i32 : i32, i32, i32
  }
  func.func @transform_1(%arg0: i32, %arg1: i32) -> (i32, i32, i32) {
    %c0_i32 = arith.constant 0 : i32
    %c0_i32_0 = arith.constant 0 : i32
    %c0_i32_1 = arith.constant 0 : i32
    return %arg0, %c0_i32, %c0_i32_0 : i32, i32, i32
  }
  func.func @transform_2(%arg0: i32, %arg1: i32) -> (i32, i32, i32) {
    %c0_i32 = arith.constant 0 : i32
    %c0_i32_0 = arith.constant 0 : i32
    %c0_i32_1 = arith.constant 0 : i32
    return %arg0, %c0_i32, %c0_i32_0 : i32, i32, i32
  }
  func.func @transform_3(%arg0: i32, %arg1: i32) -> (i32, i32) {
    %c0_i32 = arith.constant 0 : i32
    %c0_i32_0 = arith.constant 0 : i32
    %c0_i32_1 = arith.constant 0 : i32
    return %c0_i32, %c0_i32_0 : i32, i32
  }
  func.func @transform_4(%arg0: i32, %arg1: i32) -> (i32, i32) {
    %c0_i32 = arith.constant 0 : i32
    %c0_i32_0 = arith.constant 0 : i32
    %c0_i32_1 = arith.constant 0 : i32
    return %c0_i32, %c0_i32_0 : i32, i32
  }
  func.func @transform_5(%arg0: i32, %arg1: i32) -> (i32, i32) {
    %c0_i32 = arith.constant 0 : i32
    %c0_i32_0 = arith.constant 0 : i32
    %c0_i32_1 = arith.constant 0 : i32
    return %c0_i32, %c0_i32_0 : i32, i32
  }
  func.func @transform_6(%arg0: i32, %arg1: i32) -> (i32, i32) {
    %c0_i32 = arith.constant 0 : i32
    %c0_i32_0 = arith.constant 0 : i32
    %c0_i32_1 = arith.constant 0 : i32
    return %c0_i32, %c0_i32_0 : i32, i32
  }
  func.func @transform_7(%arg0: i32, %arg1: i32) -> (i32, i32) {
    %c0_i32 = arith.constant 0 : i32
    %c0_i32_0 = arith.constant 0 : i32
    %c0_i32_1 = arith.constant 0 : i32
    return %c0_i32, %c0_i32_0 : i32, i32
  }
  func.func @transform_8(%arg0: i32, %arg1: i32) -> (i32, i32) {
    %c0_i32 = arith.constant 0 : i32
    %c0_i32_0 = arith.constant 0 : i32
    %c0_i32_1 = arith.constant 0 : i32
    return %c0_i32, %c0_i32_0 : i32, i32
  }
  func.func @transform_9(%arg0: i32, %arg1: i32) -> (i32, i32) {
    %c0_i32 = arith.constant 0 : i32
    %c0_i32_0 = arith.constant 0 : i32
    %c0_i32_1 = arith.constant 0 : i32
    return %c0_i32, %c0_i32_0 : i32, i32
  }
  func.func @transform_10(%arg0: i32, %arg1: i32) -> (i32, i32) {
    %c0_i32 = arith.constant 0 : i32
    %c0_i32_0 = arith.constant 0 : i32
    %c0_i32_1 = arith.constant 0 : i32
    return %c0_i32, %c0_i32_0 : i32, i32
  }
  func.func @transform_11(%arg0: i32, %arg1: i32) -> (i32, i32) {
    %c0_i32 = arith.constant 0 : i32
    %c0_i32_0 = arith.constant 0 : i32
    %c0_i32_1 = arith.constant 0 : i32
    return %c0_i32, %c0_i32_0 : i32, i32
  }
  func.func @transform_12(%arg0: i32, %arg1: i32) -> (i32, i32) {
    %c0_i32 = arith.constant 0 : i32
    %c0_i32_0 = arith.constant 0 : i32
    %c0_i32_1 = arith.constant 0 : i32
    return %c0_i32, %c0_i32_0 : i32, i32
  }
  func.func @transform_13(%arg0: i32, %arg1: i32) -> (i32, i32) {
    %c0_i32 = arith.constant 0 : i32
    %c0_i32_0 = arith.constant 0 : i32
    %c0_i32_1 = arith.constant 0 : i32
    return %c0_i32, %c0_i32_0 : i32, i32
  }
  func.func @transform_14(%arg0: i32, %arg1: i32) -> (i32, i32) {
    %c0_i32 = arith.constant 0 : i32
    %c0_i32_0 = arith.constant 0 : i32
    %c0_i32_1 = arith.constant 0 : i32
    return %c0_i32, %c0_i32_0 : i32, i32
  }
  func.func @transform_15(%arg0: i32, %arg1: i32) -> (i32, i32) {
    %c0_i32 = arith.constant 0 : i32
    %c0_i32_0 = arith.constant 0 : i32
    %c0_i32_1 = arith.constant 0 : i32
    return %c0_i32, %c0_i32_0 : i32, i32
  }
  func.func @transform_16(%arg0: i32, %arg1: i32) -> (i32, i32) {
    %c0_i32 = arith.constant 0 : i32
    %c0_i32_0 = arith.constant 0 : i32
    %c0_i32_1 = arith.constant 0 : i32
    return %c0_i32, %c0_i32_0 : i32, i32
  }
  func.func @transform_17(%arg0: i32, %arg1: i32) -> (i32, i32, i32) {
    %c0_i32 = arith.constant 0 : i32
    %c0_i32_0 = arith.constant 0 : i32
    return %arg0, %arg1, %c0_i32 : i32, i32, i32
  }
}

</mosaic_0001>

<llo_original>
// kernel: tpu_custom_call.1
$region0: #{tpu_custom_call.1}
  #allocation0 [shape = 'u32[]', space=smem, size = 0x4, offset = 0x4, fixed_abs, tag = 'smem constant byte address 0x4 - core index']
  #allocation1 [shape = 'u32[144,128]{1,0:T(1,128)}', space=vmem, size = 0x12000, scoped, tag = 'internal scratch']
  #allocation2 [shape = 'bf16[4,8,8]{2,1,0:T(8,128)(2,1)}', space=vmem, size = 0x2000, scoped, tag = 'scratch operand']
  #allocation3 [shape = 'bf16[4,8,8]{2,1,0:T(8,128)(2,1)}', space=vmem, size = 0x2000, scoped, tag = 'scratch operand']
  #allocation4 [shape = 'bf16[4,8,8]{2,1,0:T(8,128)(2,1)}', space=vmem, size = 0x2000, scoped, tag = 'scratch operand']
  #allocation5 [shape = 'bf16[8,32]{1,0:T(8,128)(2,1)}', space=vmem, size = 0x800, scoped, tag = 'scratch operand']
  %s0 = inlined_call_operand.vmem [shape: f32[2,8,32], index: 0, kind: input, shape index: {}]
  %s1 = inlined_call_operand.hbm [shape: bf16[2,8,32], index: 1, kind: input, shape index: {}]
  %s2 = inlined_call_operand.vmem [shape: f32[2,1,8], index: 2, kind: input, shape index: {}]
  %s3 = inlined_call_operand.vmem [shape: bf16[32,32], index: 3, kind: input, shape index: {}]
  %s4 = inlined_call_operand.hbm [shape: f32[1,32], index: 4, kind: input, shape index: {}]
  %s5 = inlined_call_operand.vmem [shape: bf16[32,64], index: 5, kind: input, shape index: {}]
  %s6 = inlined_call_operand.hbm [shape: f32[1,64], index: 6, kind: input, shape index: {}]
  %s7 = inlined_call_operand.hbm [shape: bf16[32,32], index: 7, kind: input, shape index: {}]
  %s8 = inlined_call_operand.hbm [shape: f32[1,32], index: 8, kind: input, shape index: {}]
  %s9 = inlined_call_operand.vmem [shape: bf16[32,64], index: 9, kind: input, shape index: {}]
  %s10 = inlined_call_operand.vmem [shape: f32[1,64], index: 10, kind: input, shape index: {}]
  %s11 = inlined_call_operand.vmem [shape: bf16[64,32], index: 11, kind: input, shape index: {}]
  %s12 = inlined_call_operand.vmem [shape: f32[1,32], index: 12, kind: input, shape index: {}]
  %s13 = inlined_call_operand.vmem [shape: f32[1,32], index: 13, kind: input, shape index: {}]
  %s14 = inlined_call_operand.vmem [shape: f32[1,32], index: 14, kind: input, shape index: {}]
  %s15 = inlined_call_operand.vmem [shape: f32[1,32], index: 15, kind: input, shape index: {}]
  %s16 = inlined_call_operand.vmem [shape: f32[1,32], index: 16, kind: input, shape index: {}]
  %s17 = inlined_call_operand.hbm [shape: f32[2,8,32], index: 17, kind: output, shape index: {}]
  %s18 = sld [smem:[#allocation0]]
  $region125: #{tpu_custom_call.1} parent=0
    _
  %s20 = ssub.s32 1, %s18
  %s21 = scalar_select 0, %s20, %s18
  $region1: #{tpu_custom_call.1} parent=0
    #allocation6 [shape = 'u8[4096]{0}', space=vmem, size = 0x1000, scoped, tag = 'input window, operand 1']
    #allocation7 [shape = 's32[2]{0}', space=sflag, size = 0x8, scoped, tag = 'scoped memory for tpu_custom_call.1']
    #allocation8 [shape = 's32[2]{0}', space=sflag, size = 0x8, scoped, tag = 'scoped memory for tpu_custom_call.1']
    #allocation9 [shape = 'u8[512]{0}', space=vmem, size = 0x400, scoped, tag = 'input window, operand 4, single buffered']
    #allocation10 [shape = 's32[1]{0}', space=sflag, size = 0x4, scoped, tag = 'scoped memory for tpu_custom_call.1']
    #allocation11 [shape = 'u8[512]{0}', space=vmem, size = 0x400, scoped, tag = 'input window, operand 6, single buffered']
    #allocation12 [shape = 'u8[8192]{0}', space=vmem, size = 0x2000, scoped, tag = 'input window, operand 7, single buffered']
    #allocation13 [shape = 's32[1]{0}', space=sflag, size = 0x4, scoped, tag = 'scoped memory for tpu_custom_call.1']
    #allocation14 [shape = 'u8[512]{0}', space=vmem, size = 0x400, scoped, tag = 'input window, operand 8, single buffered']
    #allocation15 [shape = 'u8[8192]{0}', space=vmem, size = 0x2000, scoped, tag = 'output window, operand 0']
    %22 = vsyncpa [#allocation7], 0
    %s23 = scalar_lea.sflag [#allocation7], 1
    %24 = vsyncpa %s23, 0
    %25 = vsyncpa [#allocation10], 0
    %26 = vsyncpa [#allocation13], 0
    %27 = vsyncpa [#allocation8], 0
    %s28 = scalar_lea.sflag [#allocation8], 1
    %29 = vsyncpa %s28, 0
    loop: start=0, step=1, limit=4
    $region2: #{tpu_custom_call.1} parent=1 // loop_pre_header
      _
    $region3: #{tpu_custom_call.1} parent=1 // loop_header
      %s31 = sphi 0, %s35
      %p32 = scmp.ge.s32.totalorder %s31, 4
      %s38 = sphi 0, %s50
      %s39 = sphi 0, %s46
      %s40 = sphi 0, %s38
      %s41 = sphi 0, %s39
      %s42 = sphi 0, %s40
      %s43 = sphi 0, %s41
      %s55 = sphi 0, %s57
      %s58 = sphi 0, %s55
      %s59 = sphi 0, %s58
      %s75 = sphi 0, %s59
      %s81 = sphi 0, %s83
      %s84 = sphi 0, %s81
      %s85 = sphi 0, %s84
      %s101 = sphi 0, %s85
      %s107 = sphi 0, %s109
      %s110 = sphi 0, %s107
      %s111 = sphi 0, %s110
      %s127 = sphi 0, %s111
      %s131 = sphi 0, %s131
      %s133 = sphi 0, %s131
      %s134 = sphi 0, %s133
      %s148 = sphi 0, %s134
      %s152 = sphi 0, %s152
      %s154 = sphi 0, %s152
      %s155 = sphi 0, %s154
      %s169 = sphi 0, %s155
      %s173 = sphi 0, %s173
      %s175 = sphi 0, %s173
      %s176 = sphi 0, %s175
      %s190 = sphi 0, %s176
      %s194 = sphi 0, %s194
      %s196 = sphi 0, %s194
      %s197 = sphi 0, %s196
      %s211 = sphi 0, %s197
      %s215 = sphi 0, %s215
      %s217 = sphi 0, %s215
      %s218 = sphi 0, %s217
      %s232 = sphi 0, %s218
      %s236 = sphi 0, %s236
      %s238 = sphi 0, %s236
      %s239 = sphi 0, %s238
      %s253 = sphi 0, %s239
      %s257 = sphi 0, %s257
      %s259 = sphi 0, %s257
      %s260 = sphi 0, %s259
      %s274 = sphi 0, %s260
      %s278 = sphi 0, %s278
      %s280 = sphi 0, %s278
      %s281 = sphi 0, %s280
      %s295 = sphi 0, %s281
      %s299 = sphi 0, %s299
      %s301 = sphi 0, %s299
      %s302 = sphi 0, %s301
      %s316 = sphi 0, %s302
      %s320 = sphi 0, %s320
      %s322 = sphi 0, %s320
      %s323 = sphi 0, %s322
      %s337 = sphi 0, %s323
      %s341 = sphi 0, %s341
      %s343 = sphi 0, %s341
      %s344 = sphi 0, %s343
      %s358 = sphi 0, %s344
      %s362 = sphi 0, %s362
      %s364 = sphi 0, %s362
      %s365 = sphi 0, %s364
      %s379 = sphi 0, %s365
      %s383 = sphi 0, %s383
      %s385 = sphi 0, %s383
      %s386 = sphi 0, %s385
      %s400 = sphi 0, %s386
      %s404 = sphi 0, %s404
      %s406 = sphi 0, %s404
      %s407 = sphi 0, %s406
      %s421 = sphi 0, %s407
      %s429 = sphi 0, %s431
      %s432 = sphi 0, %s429
      %s433 = sphi 0, %s432
      %s449 = sphi 0, %s433
    $region4: #{tpu_custom_call.1} parent=1 // loop_header_branch
      %34 = sbr.rel (%p32) target = $region8
    $region5: #{tpu_custom_call.1} parent=1 // loop_body
      %s36 = ssub.s32 %s31, 1
      %s37 = ssub.s32 %s31, 2
      %s44 = sadd.s32 1, %s39
      %p45 = scmp.ge.s32.totalorder %s44, 1
      %s46 = scalar_select %p45, 0, %s44
      %s47 = sadd.s32 1, %s38
      %s48 = scalar_select %p45, %s47, %s38
      %p49 = scmp.ge.s32.totalorder %s48, 2
      %s50 = scalar_select %p49, 0, %s48
      %s51 = ssub.s32 %s38, %s50
      %s52 = ssub.s32 %s39, %s46
      %s53 = sor.u32 %s51, %s52
      %p54 = scmp.eq.s32.totalorder %s53, 0
      %s56 = sadd.s32 %s55, 1
      %s57 = scalar_select %p54, %s55, %s56
      %p60 = pneg %p54
      %p61 = scmp.eq.s32.totalorder %s31, 1
      %p62 = por %p60, %p61
      %p63 = scmp.ne.s32.totalorder %s55, %s58
      %p64 = scmp.eq.s32.totalorder %s31, 0
      %p65 = por %p63, %p64
      %p66 = scmp.ne.s32.totalorder %s55, %s58
      %p67 = scmp.eq.s32.totalorder %s36, 1
      %p68 = por %p66, %p67
      %p69 = scmp.ne.s32.totalorder %s58, %s59
      %p70 = scmp.eq.s32.totalorder %s36, 0
      %p71 = por %p69, %p70
      %p72 = scmp.ne.s32.totalorder %s58, %s59
      %p73 = scmp.eq.s32.totalorder %s37, 1
      %p74 = por %p72, %p73
      %p76 = scmp.ne.s32.totalorder %s59, %s75
      %p77 = scmp.eq.s32.totalorder %s37, 0
      %p78 = por %p76, %p77
      %s79 = ssub.s32 %s38, %s50
      %p80 = scmp.eq.s32.totalorder %s79, 0
      %s82 = sadd.s32 %s81, 1
      %s83 = scalar_select %p80, %s81, %s82
      %p86 = pneg %p80
      %p87 = scmp.eq.s32.totalorder %s31, 1
      %p88 = por %p86, %p87
      %p89 = scmp.ne.s32.totalorder %s81, %s84
      %p90 = scmp.eq.s32.totalorder %s31, 0
      %p91 = por %p89, %p90
      %p92 = scmp.ne.s32.totalorder %s81, %s84
      %p93 = scmp.eq.s32.totalorder %s36, 1
      %p94 = por %p92, %p93
      %p95 = scmp.ne.s32.totalorder %s84, %s85
      %p96 = scmp.eq.s32.totalorder %s36, 0
      %p97 = por %p95, %p96
      %p98 = scmp.ne.s32.totalorder %s84, %s85
      %p99 = scmp.eq.s32.totalorder %s37, 1
      %p100 = por %p98, %p99
      %p102 = scmp.ne.s32.totalorder %s85, %s101
      %p103 = scmp.eq.s32.totalorder %s37, 0
      %p104 = por %p102, %p103
      %s105 = ssub.s32 %s38, %s50
      %p106 = scmp.eq.s32.totalorder %s105, 0
      %s108 = sadd.s32 %s107, 1
      %s109 = scalar_select %p106, %s107, %s108
      %p112 = pneg %p106
      %p113 = scmp.eq.s32.totalorder %s31, 1
      %p114 = por %p112, %p113
      %p115 = scmp.ne.s32.totalorder %s107, %s110
      %p116 = scmp.eq.s32.totalorder %s31, 0
      %p117 = por %p115, %p116
      %p118 = scmp.ne.s32.totalorder %s107, %s110
      %p119 = scmp.eq.s32.totalorder %s36, 1
      %p120 = por %p118, %p119
      %p121 = scmp.ne.s32.totalorder %s110, %s111
      %p122 = scmp.eq.s32.totalorder %s36, 0
      %p123 = por %p121, %p122
      %p124 = scmp.ne.s32.totalorder %s110, %s111
      %p125 = scmp.eq.s32.totalorder %s37, 1
      %p126 = por %p124, %p125
      %p128 = scmp.ne.s32.totalorder %s111, %s127
      %p129 = scmp.eq.s32.totalorder %s37, 0
      %p130 = por %p128, %p129
      %s132 = sadd.s32 %s131, 1
      %p135 = scmp.eq.s32.totalorder %s31, 1
      %p136 = scmp.ne.s32.totalorder %s131, %s133
      %p137 = scmp.eq.s32.totalorder %s31, 0
      %p138 = por %p136, %p137
      %p139 = scmp.ne.s32.totalorder %s131, %s133
      %p140 = scmp.eq.s32.totalorder %s36, 1
      %p141 = por %p139, %p140
      %p142 = scmp.ne.s32.totalorder %s133, %s134
      %p143 = scmp.eq.s32.totalorder %s36, 0
      %p144 = por %p142, %p143
      %p145 = scmp.ne.s32.totalorder %s133, %s134
      %p146 = scmp.eq.s32.totalorder %s37, 1
      %p147 = por %p145, %p146
      %p149 = scmp.ne.s32.totalorder %s134, %s148
      %p150 = scmp.eq.s32.totalorder %s37, 0
      %p151 = por %p149, %p150
      %s153 = sadd.s32 %s152, 1
      %p156 = scmp.eq.s32.totalorder %s31, 1
      %p157 = scmp.ne.s32.totalorder %s152, %s154
      %p158 = scmp.eq.s32.totalorder %s31, 0
      %p159 = por %p157, %p158
      %p160 = scmp.ne.s32.totalorder %s152, %s154
      %p161 = scmp.eq.s32.totalorder %s36, 1
      %p162 = por %p160, %p161
      %p163 = scmp.ne.s32.totalorder %s154, %s155
      %p164 = scmp.eq.s32.totalorder %s36, 0
      %p165 = por %p163, %p164
      %p166 = scmp.ne.s32.totalorder %s154, %s155
      %p167 = scmp.eq.s32.totalorder %s37, 1
      %p168 = por %p166, %p167
      %p170 = scmp.ne.s32.totalorder %s155, %s169
      %p171 = scmp.eq.s32.totalorder %s37, 0
      %p172 = por %p170, %p171
      %s174 = sadd.s32 %s173, 1
      %p177 = scmp.eq.s32.totalorder %s31, 1
      %p178 = scmp.ne.s32.totalorder %s173, %s175
      %p179 = scmp.eq.s32.totalorder %s31, 0
      %p180 = por %p178, %p179
      %p181 = scmp.ne.s32.totalorder %s173, %s175
      %p182 = scmp.eq.s32.totalorder %s36, 1
      %p183 = por %p181, %p182
      %p184 = scmp.ne.s32.totalorder %s175, %s176
      %p185 = scmp.eq.s32.totalorder %s36, 0
      %p186 = por %p184, %p185
      %p187 = scmp.ne.s32.totalorder %s175, %s176
      %p188 = scmp.eq.s32.totalorder %s37, 1
      %p189 = por %p187, %p188
      %p191 = scmp.ne.s32.totalorder %s176, %s190
      %p192 = scmp.eq.s32.totalorder %s37, 0
      %p193 = por %p191, %p192
      %s195 = sadd.s32 %s194, 1
      %p198 = scmp.eq.s32.totalorder %s31, 1
      %p199 = scmp.ne.s32.totalorder %s194, %s196
      %p200 = scmp.eq.s32.totalorder %s31, 0
      %p201 = por %p199, %p200
      %p202 = scmp.ne.s32.totalorder %s194, %s196
      %p203 = scmp.eq.s32.totalorder %s36, 1
      %p204 = por %p202, %p203
      %p205 = scmp.ne.s32.totalorder %s196, %s197
      %p206 = scmp.eq.s32.totalorder %s36, 0
      %p207 = por %p205, %p206
      %p208 = scmp.ne.s32.totalorder %s196, %s197
      %p209 = scmp.eq.s32.totalorder %s37, 1
      %p210 = por %p208, %p209
      %p212 = scmp.ne.s32.totalorder %s197, %s211
      %p213 = scmp.eq.s32.totalorder %s37, 0
      %p214 = por %p212, %p213
      %s216 = sadd.s32 %s215, 1
      %p219 = scmp.eq.s32.totalorder %s31, 1
      %p220 = scmp.ne.s32.totalorder %s215, %s217
      %p221 = scmp.eq.s32.totalorder %s31, 0
      %p222 = por %p220, %p221
      %p223 = scmp.ne.s32.totalorder %s215, %s217
      %p224 = scmp.eq.s32.totalorder %s36, 1
      %p225 = por %p223, %p224
      %p226 = scmp.ne.s32.totalorder %s217, %s218
      %p227 = scmp.eq.s32.totalorder %s36, 0
      %p228 = por %p226, %p227
      %p229 = scmp.ne.s32.totalorder %s217, %s218
      %p230 = scmp.eq.s32.totalorder %s37, 1
      %p231 = por %p229, %p230
      %p233 = scmp.ne.s32.totalorder %s218, %s232
      %p234 = scmp.eq.s32.totalorder %s37, 0
      %p235 = por %p233, %p234
      %s237 = sadd.s32 %s236, 1
      %p240 = scmp.eq.s32.totalorder %s31, 1
      %p241 = scmp.ne.s32.totalorder %s236, %s238
      %p242 = scmp.eq.s32.totalorder %s31, 0
      %p243 = por %p241, %p242
      %p244 = scmp.ne.s32.totalorder %s236, %s238
      %p245 = scmp.eq.s32.totalorder %s36, 1
      %p246 = por %p244, %p245
      %p247 = scmp.ne.s32.totalorder %s238, %s239
      %p248 = scmp.eq.s32.totalorder %s36, 0
      %p249 = por %p247, %p248
      %p250 = scmp.ne.s32.totalorder %s238, %s239
      %p251 = scmp.eq.s32.totalorder %s37, 1
      %p252 = por %p250, %p251
      %p254 = scmp.ne.s32.totalorder %s239, %s253
      %p255 = scmp.eq.s32.totalorder %s37, 0
      %p256 = por %p254, %p255
      %s258 = sadd.s32 %s257, 1
      %p261 = scmp.eq.s32.totalorder %s31, 1
      %p262 = scmp.ne.s32.totalorder %s257, %s259
      %p263 = scmp.eq.s32.totalorder %s31, 0
      %p264 = por %p262, %p263
      %p265 = scmp.ne.s32.totalorder %s257, %s259
      %p266 = scmp.eq.s32.totalorder %s36, 1
      %p267 = por %p265, %p266
      %p268 = scmp.ne.s32.totalorder %s259, %s260
      %p269 = scmp.eq.s32.totalorder %s36, 0
      %p270 = por %p268, %p269
      %p271 = scmp.ne.s32.totalorder %s259, %s260
      %p272 = scmp.eq.s32.totalorder %s37, 1
      %p273 = por %p271, %p272
      %p275 = scmp.ne.s32.totalorder %s260, %s274
      %p276 = scmp.eq.s32.totalorder %s37, 0
      %p277 = por %p275, %p276
      %s279 = sadd.s32 %s278, 1
      %p282 = scmp.eq.s32.totalorder %s31, 1
      %p283 = scmp.ne.s32.totalorder %s278, %s280
      %p284 = scmp.eq.s32.totalorder %s31, 0
      %p285 = por %p283, %p284
      %p286 = scmp.ne.s32.totalorder %s278, %s280
      %p287 = scmp.eq.s32.totalorder %s36, 1
      %p288 = por %p286, %p287
      %p289 = scmp.ne.s32.totalorder %s280, %s281
      %p290 = scmp.eq.s32.totalorder %s36, 0
      %p291 = por %p289, %p290
      %p292 = scmp.ne.s32.totalorder %s280, %s281
      %p293 = scmp.eq.s32.totalorder %s37, 1
      %p294 = por %p292, %p293
      %p296 = scmp.ne.s32.totalorder %s281, %s295
      %p297 = scmp.eq.s32.totalorder %s37, 0
      %p298 = por %p296, %p297
      %s300 = sadd.s32 %s299, 1
      %p303 = scmp.eq.s32.totalorder %s31, 1
      %p304 = scmp.ne.s32.totalorder %s299, %s301
      %p305 = scmp.eq.s32.totalorder %s31, 0
      %p306 = por %p304, %p305
      %p307 = scmp.ne.s32.totalorder %s299, %s301
      %p308 = scmp.eq.s32.totalorder %s36, 1
      %p309 = por %p307, %p308
      %p310 = scmp.ne.s32.totalorder %s301, %s302
      %p311 = scmp.eq.s32.totalorder %s36, 0
      %p312 = por %p310, %p311
      %p313 = scmp.ne.s32.totalorder %s301, %s302
      %p314 = scmp.eq.s32.totalorder %s37, 1
      %p315 = por %p313, %p314
      %p317 = scmp.ne.s32.totalorder %s302, %s316
      %p318 = scmp.eq.s32.totalorder %s37, 0
      %p319 = por %p317, %p318
      %s321 = sadd.s32 %s320, 1
      %p324 = scmp.eq.s32.totalorder %s31, 1
      %p325 = scmp.ne.s32.totalorder %s320, %s322
      %p326 = scmp.eq.s32.totalorder %s31, 0
      %p327 = por %p325, %p326
      %p328 = scmp.ne.s32.totalorder %s320, %s322
      %p329 = scmp.eq.s32.totalorder %s36, 1
      %p330 = por %p328, %p329
      %p331 = scmp.ne.s32.totalorder %s322, %s323
      %p332 = scmp.eq.s32.totalorder %s36, 0
      %p333 = por %p331, %p332
      %p334 = scmp.ne.s32.totalorder %s322, %s323
      %p335 = scmp.eq.s32.totalorder %s37, 1
      %p336 = por %p334, %p335
      %p338 = scmp.ne.s32.totalorder %s323, %s337
      %p339 = scmp.eq.s32.totalorder %s37, 0
      %p340 = por %p338, %p339
      %s342 = sadd.s32 %s341, 1
      %p345 = scmp.eq.s32.totalorder %s31, 1
      %p346 = scmp.ne.s32.totalorder %s341, %s343
      %p347 = scmp.eq.s32.totalorder %s31, 0
      %p348 = por %p346, %p347
      %p349 = scmp.ne.s32.totalorder %s341, %s343
      %p350 = scmp.eq.s32.totalorder %s36, 1
      %p351 = por %p349, %p350
      %p352 = scmp.ne.s32.totalorder %s343, %s344
      %p353 = scmp.eq.s32.totalorder %s36, 0
      %p354 = por %p352, %p353
      %p355 = scmp.ne.s32.totalorder %s343, %s344
      %p356 = scmp.eq.s32.totalorder %s37, 1
      %p357 = por %p355, %p356
      %p359 = scmp.ne.s32.totalorder %s344, %s358
      %p360 = scmp.eq.s32.totalorder %s37, 0
      %p361 = por %p359, %p360
      %s363 = sadd.s32 %s362, 1
      %p366 = scmp.eq.s32.totalorder %s31, 1
      %p367 = scmp.ne.s32.totalorder %s362, %s364
      %p368 = scmp.eq.s32.totalorder %s31, 0
      %p369 = por %p367, %p368
      %p370 = scmp.ne.s32.totalorder %s362, %s364
      %p371 = scmp.eq.s32.totalorder %s36, 1
      %p372 = por %p370, %p371
      %p373 = scmp.ne.s32.totalorder %s364, %s365
      %p374 = scmp.eq.s32.totalorder %s36, 0
      %p375 = por %p373, %p374
      %p376 = scmp.ne.s32.totalorder %s364, %s365
      %p377 = scmp.eq.s32.totalorder %s37, 1
      %p378 = por %p376, %p377
      %p380 = scmp.ne.s32.totalorder %s365, %s379
      %p381 = scmp.eq.s32.totalorder %s37, 0
      %p382 = por %p380, %p381
      %s384 = sadd.s32 %s383, 1
      %p387 = scmp.eq.s32.totalorder %s31, 1
      %p388 = scmp.ne.s32.totalorder %s383, %s385
      %p389 = scmp.eq.s32.totalorder %s31, 0
      %p390 = por %p388, %p389
      %p391 = scmp.ne.s32.totalorder %s383, %s385
      %p392 = scmp.eq.s32.totalorder %s36, 1
      %p393 = por %p391, %p392
      %p394 = scmp.ne.s32.totalorder %s385, %s386
      %p395 = scmp.eq.s32.totalorder %s36, 0
      %p396 = por %p394, %p395
      %p397 = scmp.ne.s32.totalorder %s385, %s386
      %p398 = scmp.eq.s32.totalorder %s37, 1
      %p399 = por %p397, %p398
      %p401 = scmp.ne.s32.totalorder %s386, %s400
      %p402 = scmp.eq.s32.totalorder %s37, 0
      %p403 = por %p401, %p402
      %s405 = sadd.s32 %s404, 1
      %p408 = scmp.eq.s32.totalorder %s31, 1
      %p409 = scmp.ne.s32.totalorder %s404, %s406
      %p410 = scmp.eq.s32.totalorder %s31, 0
      %p411 = por %p409, %p410
      %p412 = scmp.ne.s32.totalorder %s404, %s406
      %p413 = scmp.eq.s32.totalorder %s36, 1
      %p414 = por %p412, %p413
      %p415 = scmp.ne.s32.totalorder %s406, %s407
      %p416 = scmp.eq.s32.totalorder %s36, 0
      %p417 = por %p415, %p416
      %p418 = scmp.ne.s32.totalorder %s406, %s407
      %p419 = scmp.eq.s32.totalorder %s37, 1
      %p420 = por %p418, %p419
      %p422 = scmp.ne.s32.totalorder %s407, %s421
      %p423 = scmp.eq.s32.totalorder %s37, 0
      %p424 = por %p422, %p423
      %s425 = ssub.s32 %s38, %s50
      %s426 = ssub.s32 %s39, %s46
      %s427 = sor.u32 %s425, %s426
      %p428 = scmp.eq.s32.totalorder %s427, 0
      %s430 = sadd.s32 %s429, 1
      %s431 = scalar_select %p428, %s429, %s430
      %p434 = pneg %p428
      %p435 = scmp.eq.s32.totalorder %s31, 1
      %p436 = por %p434, %p435
      %p437 = scmp.ne.s32.totalorder %s429, %s432
      %p438 = scmp.eq.s32.totalorder %s31, 0
      %p439 = por %p437, %p438
      %p440 = scmp.ne.s32.totalorder %s429, %s432
      %p441 = scmp.eq.s32.totalorder %s36, 1
      %p442 = por %p440, %p441
      %p443 = scmp.ne.s32.totalorder %s432, %s433
      %p444 = scmp.eq.s32.totalorder %s36, 0
      %p445 = por %p443, %p444
      %p446 = scmp.ne.s32.totalorder %s432, %s433
      %p447 = scmp.eq.s32.totalorder %s37, 1
      %p448 = por %p446, %p447
      %p450 = scmp.ne.s32.totalorder %s433, %s449
      %p451 = scmp.eq.s32.totalorder %s37, 0
      %p452 = por %p450, %p451
      %p453 = scmp.le.s32.totalorder 1, %s31
      %p454 = scmp.lt.s32.totalorder %s31, 3
      %p455 = pnand %p453, %p454
      %p456 = pneg %p455
      // Predicated region
      $region9: #{tpu_custom_call.1} parent=5 // pred_check
        _
      $region10: #{tpu_custom_call.1} parent=5 // pred_check_branch
        %458 = sbr.rel (%p455) target = $region12
      $region11: #{tpu_custom_call.1} parent=5 // pred_region
        %s459 = ssub.s32 %s31, 1
        // Predicated region
        $region13: #{tpu_custom_call.1} parent=11 // pred_check
          %p460 = pneg %p144
        $region14: #{tpu_custom_call.1} parent=11 // pred_check_branch
          %462 = sbr.rel (%p460) target = $region16
        $region15: #{tpu_custom_call.1} parent=11 // pred_region
          _
        $region16: #{tpu_custom_call.1} parent=11 // pred_fallthru
          _
        // Predicated region
        $region17: #{tpu_custom_call.1} parent=11 // pred_check
          %p463 = pneg %p165
        $region18: #{tpu_custom_call.1} parent=11 // pred_check_branch
          %465 = sbr.rel (%p463) target = $region20
        $region19: #{tpu_custom_call.1} parent=11 // pred_region
          %s467 = ssub.s32 16, 16
          %468 = vsyncadd [#allocation10], %s467
          %s470 = sshll.u32 [#allocation9], 4
          %s471 = int_to_ptr.vmem [resolvable:$true] %s470
          %473 = dma.hbm_to_vmem [thread:$0]  %s4, 16, %s471, [#allocation10]
        $region20: #{tpu_custom_call.1} parent=11 // pred_fallthru
          _
        // Predicated region
        $region21: #{tpu_custom_call.1} parent=11 // pred_check
          %p474 = pneg %p186
        $region22: #{tpu_custom_call.1} parent=11 // pred_check_branch
          %476 = sbr.rel (%p474) target = $region24
        $region23: #{tpu_custom_call.1} parent=11 // pred_region
          _
        $region24: #{tpu_custom_call.1} parent=11 // pred_fallthru
          _
        // Predicated region
        $region25: #{tpu_custom_call.1} parent=11 // pred_check
          %p477 = pneg %p207
        $region26: #{tpu_custom_call.1} parent=11 // pred_check_branch
          %479 = sbr.rel (%p477) target = $region28
        $region27: #{tpu_custom_call.1} parent=11 // pred_region
          %s481 = ssub.s32 16, 16
          %482 = vsyncadd [#allocation10], %s481
          %s484 = sshll.u32 [#allocation11], 4
          %s485 = int_to_ptr.vmem [resolvable:$true] %s484
          %487 = dma.hbm_to_vmem [thread:$0]  %s6, 16, %s485, [#allocation10]
        $region28: #{tpu_custom_call.1} parent=11 // pred_fallthru
          _
        // Predicated region
        $region29: #{tpu_custom_call.1} parent=11 // pred_check
          %p488 = pneg %p228
        $region30: #{tpu_custom_call.1} parent=11 // pred_check_branch
          %490 = sbr.rel (%p488) target = $region32
        $region31: #{tpu_custom_call.1} parent=11 // pred_region
          %s492 = ssub.s32 256, 256
          %493 = vsyncadd [#allocation13], %s492
          %s494 = sshll.u32 [#allocation12], 4
          %s495 = int_to_ptr.vmem [resolvable:$true] %s494
          %500 = dma.hbm_to_vmem [thread:$0]  %s7, 256, %s495, [#allocation13], 64, 64, 4
        $region32: #{tpu_custom_call.1} parent=11 // pred_fallthru
          _
        // Predicated region
        $region33: #{tpu_custom_call.1} parent=11 // pred_check
          %p501 = pneg %p249
        $region34: #{tpu_custom_call.1} parent=11 // pred_check_branch
          %503 = sbr.rel (%p501) target = $region36
        $region35: #{tpu_custom_call.1} parent=11 // pred_region
          %s505 = ssub.s32 16, 16
          %506 = vsyncadd [#allocation13], %s505
          %s508 = sshll.u32 [#allocation14], 4
          %s509 = int_to_ptr.vmem [resolvable:$true] %s508
          %511 = dma.hbm_to_vmem [thread:$0]  %s8, 16, %s509, [#allocation13]
        $region36: #{tpu_custom_call.1} parent=11 // pred_fallthru
          _
        // Predicated region
        $region37: #{tpu_custom_call.1} parent=11 // pred_check
          %p512 = pneg %p270
        $region38: #{tpu_custom_call.1} parent=11 // pred_check_branch
          %514 = sbr.rel (%p512) target = $region40
        $region39: #{tpu_custom_call.1} parent=11 // pred_region
          _
        $region40: #{tpu_custom_call.1} parent=11 // pred_fallthru
          _
        // Predicated region
        $region41: #{tpu_custom_call.1} parent=11 // pred_check
          %p515 = pneg %p291
        $region42: #{tpu_custom_call.1} parent=11 // pred_check_branch
          %517 = sbr.rel (%p515) target = $region44
        $region43: #{tpu_custom_call.1} parent=11 // pred_region
          _
        $region44: #{tpu_custom_call.1} parent=11 // pred_fallthru
          _
        // Predicated region
        $region45: #{tpu_custom_call.1} parent=11 // pred_check
          %p518 = pneg %p312
        $region46: #{tpu_custom_call.1} parent=11 // pred_check_branch
          %520 = sbr.rel (%p518) target = $region48
        $region47: #{tpu_custom_call.1} parent=11 // pred_region
          _
        $region48: #{tpu_custom_call.1} parent=11 // pred_fallthru
          _
        // Predicated region
        $region49: #{tpu_custom_call.1} parent=11 // pred_check
          %p521 = pneg %p333
        $region50: #{tpu_custom_call.1} parent=11 // pred_check_branch
          %523 = sbr.rel (%p521) target = $region52
        $region51: #{tpu_custom_call.1} parent=11 // pred_region
          _
        $region52: #{tpu_custom_call.1} parent=11 // pred_fallthru
          _
        // Predicated region
        $region53: #{tpu_custom_call.1} parent=11 // pred_check
          %p524 = pneg %p354
        $region54: #{tpu_custom_call.1} parent=11 // pred_check_branch
          %526 = sbr.rel (%p524) target = $region56
        $region55: #{tpu_custom_call.1} parent=11 // pred_region
          _
        $region56: #{tpu_custom_call.1} parent=11 // pred_fallthru
          _
        // Predicated region
        $region57: #{tpu_custom_call.1} parent=11 // pred_check
          %p527 = pneg %p375
        $region58: #{tpu_custom_call.1} parent=11 // pred_check_branch
          %529 = sbr.rel (%p527) target = $region60
        $region59: #{tpu_custom_call.1} parent=11 // pred_region
          _
        $region60: #{tpu_custom_call.1} parent=11 // pred_fallthru
          _
        // Predicated region
        $region61: #{tpu_custom_call.1} parent=11 // pred_check
          %p530 = pneg %p396
        $region62: #{tpu_custom_call.1} parent=11 // pred_check_branch
          %532 = sbr.rel (%p530) target = $region64
        $region63: #{tpu_custom_call.1} parent=11 // pred_region
          _
        $region64: #{tpu_custom_call.1} parent=11 // pred_fallthru
          _
        // Predicated region
        $region65: #{tpu_custom_call.1} parent=11 // pred_check
          %p533 = pneg %p417
        $region66: #{tpu_custom_call.1} parent=11 // pred_check_branch
          %535 = sbr.rel (%p533) target = $region68
        $region67: #{tpu_custom_call.1} parent=11 // pred_region
          _
        $region68: #{tpu_custom_call.1} parent=11 // pred_fallthru
          _
      $region12: #{tpu_custom_call.1} parent=5 // pred_fallthru
        _
      %p536 = scmp.lt.s32.totalorder %s31, 2
      // Predicated region
      $region69: #{tpu_custom_call.1} parent=5 // pred_check
        %p537 = pneg %p536
      $region70: #{tpu_custom_call.1} parent=5 // pred_check_branch
        %539 = sbr.rel (%p537) target = $region72
      $region71: #{tpu_custom_call.1} parent=5 // pred_region
        // Predicated region
        $region73: #{tpu_custom_call.1} parent=71 // pred_check
          %p540 = pneg %p65
        $region74: #{tpu_custom_call.1} parent=71 // pred_check_branch
          %542 = sbr.rel (%p540) target = $region76
        $region75: #{tpu_custom_call.1} parent=71 // pred_region
          %p543 = scmp.lt.s32.totalorder %s38, 1
          %s544 = scalar_select %p543, %s38, 1
          %p545 = scmp.lt.s32.totalorder %s39, 0
          %s546 = scalar_select %p545, %s39, 0
          %s547 = sadd.s32 %s546, %s544
          %s548 = smul.addr %s547, 8
          %s549 = scalar_lea.vmem %s0, %s548
        $region76: #{tpu_custom_call.1} parent=71 // pred_fallthru
          _
        // Predicated region
        $region77: #{tpu_custom_call.1} parent=71 // pred_check
          %p550 = pneg %p91
        $region78: #{tpu_custom_call.1} parent=71 // pred_check_branch
          %552 = sbr.rel (%p550) target = $region80
        $region79: #{tpu_custom_call.1} parent=71 // pred_region
          %s553 = sand.u32 %s81, 1
          %s554 = scalar_lea.sflag [#allocation7], %s553
          %s555 = sand.u32 %s81, 1
          %s556 = smul.addr %s555, 4
          %s557 = scalar_lea.vmem [#allocation6], %s556
          %s559 = ssub.s32 64, 64
          %560 = vsyncadd %s554, %s559
          %s561 = smul.addr %s38, 64
          %s562 = scalar_lea.hbm %s1, %s561
          %s564 = sshll.u32 %s557, 4
          %s565 = int_to_ptr.vmem [resolvable:$true] %s564
          %567 = dma.hbm_to_vmem [thread:$0]  %s562, 64, %s565, %s554
        $region80: #{tpu_custom_call.1} parent=71 // pred_fallthru
          _
        // Predicated region
        $region81: #{tpu_custom_call.1} parent=71 // pred_check
          %p568 = pneg %p117
        $region82: #{tpu_custom_call.1} parent=71 // pred_check_branch
          %570 = sbr.rel (%p568) target = $region84
        $region83: #{tpu_custom_call.1} parent=71 // pred_region
          %p571 = scmp.lt.s32.totalorder %s38, 1
          %s572 = scalar_select %p571, %s38, 1
          %s573 = scalar_lea.vmem %s2, %s572
        $region84: #{tpu_custom_call.1} parent=71 // pred_fallthru
          _
      $region72: #{tpu_custom_call.1} parent=5 // pred_fallthru
        _
      %p574 = scmp.le.s32.totalorder 1, %s31
      %p575 = scmp.lt.s32.totalorder %s31, 3
      %p576 = pnand %p574, %p575
      %p577 = pneg %p576
      // Predicated region
      $region85: #{tpu_custom_call.1} parent=5 // pred_check
        _
      $region86: #{tpu_custom_call.1} parent=5 // pred_check_branch
        %579 = sbr.rel (%p576) target = $region88
      $region87: #{tpu_custom_call.1} parent=5 // pred_region
        %s580 = ssub.s32 %s31, 1
        %s581 = sand.u32 %s84, 1
        %s582 = scalar_lea.sflag [#allocation7], %s581
        %s583 = sand.u32 %s84, 1
        %s584 = smul.addr %s583, 4
        %s585 = scalar_lea.vmem [#allocation6], %s584
        // Predicated region
        $region89: #{tpu_custom_call.1} parent=87 // pred_check
          %p586 = pneg %p97
        $region90: #{tpu_custom_call.1} parent=87 // pred_check_branch
          %588 = sbr.rel (%p586) target = $region92
        $region91: #{tpu_custom_call.1} parent=87 // pred_region
          %589 = dma.done %s582, 64
        $region92: #{tpu_custom_call.1} parent=87 // pred_fallthru
          _
        // Predicated region
        $region93: #{tpu_custom_call.1} parent=87 // pred_check
          %p590 = pneg %p165
        $region94: #{tpu_custom_call.1} parent=87 // pred_check_branch
          %592 = sbr.rel (%p590) target = $region96
        $region95: #{tpu_custom_call.1} parent=87 // pred_region
          %593 = dma.done [#allocation10], 16
        $region96: #{tpu_custom_call.1} parent=87 // pred_fallthru
          _
        // Predicated region
        $region97: #{tpu_custom_call.1} parent=87 // pred_check
          %p594 = pneg %p207
        $region98: #{tpu_custom_call.1} parent=87 // pred_check_branch
          %596 = sbr.rel (%p594) target = $region100
        $region99: #{tpu_custom_call.1} parent=87 // pred_region
          %597 = dma.done [#allocation10], 16
        $region100: #{tpu_custom_call.1} parent=87 // pred_fallthru
          _
        // Predicated region
        $region101: #{tpu_custom_call.1} parent=87 // pred_check
          %p598 = pneg %p228
        $region102: #{tpu_custom_call.1} parent=87 // pred_check_branch
          %600 = sbr.rel (%p598) target = $region104
        $region103: #{tpu_custom_call.1} parent=87 // pred_region
          %601 = dma.done [#allocation13], 256
        $region104: #{tpu_custom_call.1} parent=87 // pred_fallthru
          _
        // Predicated region
        $region105: #{tpu_custom_call.1} parent=87 // pred_check
          %p602 = pneg %p249
        $region106: #{tpu_custom_call.1} parent=87 // pred_check_branch
          %604 = sbr.rel (%p602) target = $region108
        $region107: #{tpu_custom_call.1} parent=87 // pred_region
          %605 = dma.done [#allocation13], 16
        $region108: #{tpu_custom_call.1} parent=87 // pred_fallthru
          _
        %p606 = scmp.lt.s32.totalorder %s40, 1
        %s607 = scalar_select %p606, %s40, 1
        %p608 = scmp.lt.s32.totalorder %s41, 0
        %s609 = scalar_select %p608, %s41, 0
        %s610 = sadd.s32 %s609, %s607
        %s611 = smul.addr %s610, 8
        %s612 = scalar_lea.vmem %s0, %s611
        %p613 = pneg %p71
        %p614 = pneg %p68
        %s615 = sand.u32 %s84, 1
        %s616 = scalar_lea.sflag [#allocation7], %s615
        %s617 = sand.u32 %s84, 1
        %s618 = smul.addr %s617, 4
        %s619 = scalar_lea.vmem [#allocation6], %s618
        %p620 = pneg %p97
        %p621 = pneg %p94
        %p622 = scmp.lt.s32.totalorder %s40, 1
        %s623 = scalar_select %p622, %s40, 1
        %s624 = scalar_lea.vmem %s2, %s623
        %p625 = pneg %p123
        %p626 = pneg %p120
        %p627 = pneg %p144
        %p628 = pneg %p141
        %p629 = pneg %p165
        %p630 = pneg %p162
        %p631 = pneg %p186
        %p632 = pneg %p183
        %p633 = pneg %p207
        %p634 = pneg %p204
        %p635 = pneg %p228
        %p636 = pneg %p225
        %p637 = pneg %p249
        %p638 = pneg %p246
        %p639 = pneg %p270
        %p640 = pneg %p267
        %p641 = pneg %p291
        %p642 = pneg %p288
        %p643 = pneg %p312
        %p644 = pneg %p309
        %p645 = pneg %p333
        %p646 = pneg %p330
        %p647 = pneg %p354
        %p648 = pneg %p351
        %p649 = pneg %p375
        %p650 = pneg %p372
        %p651 = pneg %p396
        %p652 = pneg %p393
        %p653 = pneg %p417
        %p654 = pneg %p414
        %p655 = pneg %p445
        %p656 = pneg %p442
        %s657 = sand.u32 %s432, 1
        %s658 = scalar_lea.sflag [#allocation8], %s657
        %s659 = sand.u32 %s432, 1
        %s660 = smul.addr %s659, 8
        %s661 = scalar_lea.vmem [#allocation15], %s660
        %p662 = scmp.lt.s32.totalorder %s40, 1
        %s663 = scalar_select %p662, %s40, 1
        %p664 = scmp.lt.s32.totalorder %s41, 0
        %s665 = scalar_select %p664, %s41, 0
        %s666 = sadd.s32 %s665, %s663
        %s667 = smul.addr %s666, 8
        %s668 = scalar_lea.vmem %s0, %s667
        %p669 = scmp.lt.s32.totalorder %s40, 1
        %s670 = scalar_select %p669, %s40, 1
        %s671 = scalar_lea.vmem %s2, %s670
        %p673 = scmp.eq.s32.totalorder %s41, 0
        // Predicated region
        $region109: #{tpu_custom_call.1} parent=87 // pred_check
          %p674 = pneg %p673
        $region110: #{tpu_custom_call.1} parent=87 // pred_check_branch
          %676 = sbr.rel (%p674) target = $region112
        $region111: #{tpu_custom_call.1} parent=87 // pred_region
          %v677 = vld [vmem:[%s5] sm:$0xf]
          %v678 = vld [vmem:[%s5 + $0x4] sm:$0xf]
          %v679 = vld [vmem:[%s5 + $0x8] sm:$0xf]
          %v680 = vld [vmem:[%s5 + $0xc] sm:$0xf]
          %v681 = vld [vmem:[#allocation11] sm:$0x1]
          %v682 = vld [vmem:[%s585] sm:$0xf]
          %v684 = vlaneseq
          %v685 = vshrl.u32 %v684, 7
          %v686 = vsub.s32 0, %v685
          %v687 = vrot.slane %v681, %v686
          %v693 = vunpack.c.l.b16 %v677
          %v694 = vunpack.c.l.b16 %v678
          %v695 = vunpack.c.l.b16 %v679
          %v696 = vunpack.c.l.b16 %v680
          %v697 = vpack.c.b16 %v694, %v693
          %v698 = vpack.c.b16 %v696, %v695
          %vm701 = vcmask 261120
          %v703 = vsel %vm701, %v682, 0
          %705 = vmatprep.subr.bf16.mxu0 0
          %706 = vmatpush1.bf16.msra.mxu0 %v697
          %707 = vmatprep.subr.bf16.mxu0 0
          %708 = vmatpush1.bf16.msra.mxu0 %v698
          %709 = vmatprep.subr.bf16.mxu0 0
          %710 = vmatpush1.bf16.msra.mxu0 0
          %711 = vmatprep.subr.bf16.mxu0 0
          %712 = vmatpush1.bf16.msra.mxu0 0
          %713 = vmatprep.subr.bf16.mxu0 0
          %714 = vmatpush1.bf16.msra.mxu0 0
          %715 = vmatprep.subr.bf16.mxu0 0
          %716 = vmatpush1.bf16.msra.mxu0 0
          %717 = vmatprep.subr.bf16.mxu0 0
          %718 = vmatpush1.bf16.msra.mxu0 0
          %719 = vmatprep.subr.bf16.mxu0 0
          %720 = vmatpush1.bf16.msra.mxu0 0
          %721 = vmatprep.subr.bf16.mxu0 0
          %722 = vmatpush1.bf16.msra.mxu0 0
          %723 = vmatprep.subr.bf16.mxu0 0
          %724 = vmatpush1.bf16.msra.mxu0 0
          %725 = vmatprep.subr.bf16.mxu0 0
          %726 = vmatpush1.bf16.msra.mxu0 0
          %727 = vmatprep.subr.bf16.mxu0 0
          %728 = vmatpush1.bf16.msra.mxu0 0
          %729 = vmatprep.subr.bf16.mxu0 0
          %730 = vmatpush1.bf16.msra.mxu0 0
          %731 = vmatprep.subr.bf16.mxu0 0
          %732 = vmatpush1.bf16.msra.mxu0 0
          %733 = vmatprep.subr.bf16.mxu0 0
          %734 = vmatpush1.bf16.msra.mxu0 0
          %735 = vmatprep.subr.bf16.mxu0 0
          %736 = vmatpush1.bf16.msra.mxu0 0
          %737 = vmatprep.mubr.bf16.mxu0 0
          %738 = vmatmul.mubr.bf16.gmra.mrb[0].mxu0 %v703
          %v739 = vpop.f32.mrb[0].mxu0
          %v740 = vadd.f32 %v687, %v739
          %v741 = vpop.f32.mrb[0].mxu0
          %v742 = vpop.f32.mrb[0].mxu0
          %v743 = vpop.f32.mrb[0].mxu0
          %744 = vdwg.mxu0
          %v745 = vpack.c.bf16 %v740, %v740
          %vm746 = vcmask 60416
          %747 = vst.msk [vmem:[#allocation2] sm:$0xf] %vm746, %v745
          %v749 = vunpack.c.l.b16 %v745
          %v750 = vpack.c.b16 %v749, %v749
          %751 = vrot.lane.b32.xlu0 %v750, 96
          %v752 = vpop.permute.xlu0 %751
          %754 = vst.msk [vmem:[#allocation3] sm:$0xf] %vm746, %v752
          %755 = vrot.lane.b32.xlu0 %v750, 120
          %v756 = vpop.permute.xlu0 %755
          %s758 = scalar_lea.vmem [#allocation2], 4
          %759 = vst.msk [vmem:[%s758] sm:$0xf] %vm746, %v756
          %760 = vrot.lane.b32.xlu0 %v750, 88
          %v761 = vpop.permute.xlu0 %760
          %s763 = scalar_lea.vmem [#allocation3], 4
          %764 = vst.msk [vmem:[%s763] sm:$0xf] %vm746, %v761
          %765 = vrot.lane.b32.xlu0 %v750, 112
          %v766 = vpop.permute.xlu0 %765
          %s768 = scalar_lea.vmem [#allocation2], 8
          %769 = vst.msk [vmem:[%s768] sm:$0xf] %vm746, %v766
          %770 = vrot.lane.b32.xlu0 %v750, 80
          %v771 = vpop.permute.xlu0 %770
          %s773 = scalar_lea.vmem [#allocation3], 8
          %774 = vst.msk [vmem:[%s773] sm:$0xf] %vm746, %v771
          %775 = vrot.lane.b32.xlu0 %v750, 104
          %v776 = vpop.permute.xlu0 %775
          %s778 = scalar_lea.vmem [#allocation2], 12
          %779 = vst.msk [vmem:[%s778] sm:$0xf] %vm746, %v776
          %780 = vrot.lane.b32.xlu0 %v750, 72
          %v781 = vpop.permute.xlu0 %780
          %s783 = scalar_lea.vmem [#allocation3], 12
          %784 = vst.msk [vmem:[%s783] sm:$0xf] %vm746, %v781
        $region112: #{tpu_custom_call.1} parent=87 // pred_fallthru
          _
        %v785 = vld [vmem:[%s668] sm:$0xff]
        %v786 = vpack.c.bf16 %v785, %v785
        %v787 = vld [vmem:[%s3] sm:$0xf]
        %v788 = vld [vmem:[%s3 + $0x4] sm:$0xf]
        %v789 = vld [vmem:[%s3 + $0x8] sm:$0xf]
        %v790 = vld [vmem:[%s3 + $0xc] sm:$0xf]
        %v791 = vld [vmem:[#allocation9] sm:$0x1]
        %v793 = vlaneseq
        %v794 = vshrl.u32 %v793, 7
        %v795 = vsub.s32 0, %v794
        %v796 = vrot.slane %v791, %v795
        %v802 = vunpack.c.l.b16 %v787
        %v803 = vunpack.c.l.b16 %v788
        %v804 = vunpack.c.l.b16 %v789
        %v805 = vunpack.c.l.b16 %v790
        %v806 = vpack.c.b16 %v803, %v802
        %v807 = vpack.c.b16 %v805, %v804
        %vm810 = vcmask 261120
        %v812 = vsel %vm810, %v786, 0
        %814 = vmatprep.subr.bf16.mxu0 0
        %815 = vmatpush1.bf16.msra.mxu0 %v806
        %816 = vmatprep.subr.bf16.mxu0 0
        %817 = vmatpush1.bf16.msra.mxu0 %v807
        %818 = vmatprep.subr.bf16.mxu0 0
        %819 = vmatpush1.bf16.msra.mxu0 0
        %820 = vmatprep.subr.bf16.mxu0 0
        %821 = vmatpush1.bf16.msra.mxu0 0
        %822 = vmatprep.subr.bf16.mxu0 0
        %823 = vmatpush1.bf16.msra.mxu0 0
        %824 = vmatprep.subr.bf16.mxu0 0
        %825 = vmatpush1.bf16.msra.mxu0 0
        %826 = vmatprep.subr.bf16.mxu0 0
        %827 = vmatpush1.bf16.msra.mxu0 0
        %828 = vmatprep.subr.bf16.mxu0 0
        %829 = vmatpush1.bf16.msra.mxu0 0
        %830 = vmatprep.subr.bf16.mxu0 0
        %831 = vmatpush1.bf16.msra.mxu0 0
        %832 = vmatprep.subr.bf16.mxu0 0
        %833 = vmatpush1.bf16.msra.mxu0 0
        %834 = vmatprep.subr.bf16.mxu0 0
        %835 = vmatpush1.bf16.msra.mxu0 0
        %836 = vmatprep.subr.bf16.mxu0 0
        %837 = vmatpush1.bf16.msra.mxu0 0
        %838 = vmatprep.subr.bf16.mxu0 0
        %839 = vmatpush1.bf16.msra.mxu0 0
        %840 = vmatprep.subr.bf16.mxu0 0
        %841 = vmatpush1.bf16.msra.mxu0 0
        %842 = vmatprep.subr.bf16.mxu0 0
        %843 = vmatpush1.bf16.msra.mxu0 0
        %844 = vmatprep.subr.bf16.mxu0 0
        %845 = vmatpush1.bf16.msra.mxu0 0
        %846 = vmatprep.mubr.bf16.mxu0 0
        %847 = vmatmul.mubr.bf16.gmra.mrb[0].mxu0 %v812
        %v848 = vpop.f32.mrb[0].mxu0
        %v849 = vadd.f32 %v796, %v848
        %v850 = vpop.f32.mrb[0].mxu0
        %v851 = vpop.f32.mrb[0].mxu0
        %v852 = vpop.f32.mrb[0].mxu0
        %853 = vdwg.mxu0
        %v854 = vmul.f32 %v849, 0.35355338
        %v855 = vpack.c.bf16 %v854, %v854
        %vm856 = vcmask 60416
        %857 = vst.msk [vmem:[#allocation4] sm:$0xf] %vm856, %v855
        %v859 = vunpack.c.l.b16 %v855
        %v860 = vpack.c.b16 %v859, %v859
        %861 = vrot.lane.b32.xlu0 %v860, 120
        %v862 = vpop.permute.xlu0 %861
        %s864 = scalar_lea.vmem [#allocation4], 4
        %865 = vst.msk [vmem:[%s864] sm:$0xf] %vm856, %v862
        %866 = vrot.lane.b32.xlu0 %v860, 112
        %v867 = vpop.permute.xlu0 %866
        %s869 = scalar_lea.vmem [#allocation4], 8
        %870 = vst.msk [vmem:[%s869] sm:$0xf] %vm856, %v867
        %871 = vrot.lane.b32.xlu0 %v860, 104
        %v872 = vpop.permute.xlu0 %871
        %s874 = scalar_lea.vmem [#allocation4], 12
        %875 = vst.msk [vmem:[%s874] sm:$0xf] %vm856, %v872
        %v876 = vld [vmem:[#allocation4] sm:$0xf]
        %v877 = vld [vmem:[#allocation4 + $0x4] sm:$0xf]
        %v878 = vld [vmem:[#allocation4 + $0x8] sm:$0xf]
        %v879 = vld [vmem:[#allocation4 + $0xc] sm:$0xf]
        %v880 = vld [vmem:[%s671] sm:$0x1]
        %vm881 = vcmp.eq.f32.partialorder %v880, 0.0
        %v882 = vsel %vm881, -1e+09, 0.0
        %v883 = vld [vmem:[#allocation2] sm:$0xf]
        %v884 = vld [vmem:[#allocation2 + $0x4] sm:$0xf]
        %v885 = vld [vmem:[#allocation2 + $0x8] sm:$0xf]
        %v886 = vld [vmem:[#allocation2 + $0xc] sm:$0xf]
        %v887 = vld [vmem:[#allocation3] sm:$0xf]
        %v888 = vld [vmem:[#allocation3 + $0x4] sm:$0xf]
        %v889 = vld [vmem:[#allocation3 + $0x8] sm:$0xf]
        %v890 = vld [vmem:[#allocation3 + $0xc] sm:$0xf]
        %v892 = vlaneseq
        %v893 = vshrl.u32 %v892, 7
        %v894 = vsub.s32 0, %v893
        %v895 = vrot.slane %v882, %v894
        %vm897 = vcmask 64512
        %v899 = vsel %vm897, %v876, 0
        %v902 = vsel %vm897, %v883, 0
        %904 = vmatprep.subr.bf16.mxu0 0
        %905 = vmatpush1.bf16.xpose.msra.mxu0 %v902
        %906 = vmatprep.subr.bf16.mxu0 0
        %907 = vmatpush1.bf16.xpose.msra.mxu0 0
        %908 = vmatprep.subr.bf16.mxu0 0
        %909 = vmatpush1.bf16.xpose.msra.mxu0 0
        %910 = vmatprep.subr.bf16.mxu0 0
        %911 = vmatpush1.bf16.xpose.msra.mxu0 0
        %912 = vmatprep.subr.bf16.mxu0 0
        %913 = vmatpush1.bf16.xpose.msra.mxu0 0
        %914 = vmatprep.subr.bf16.mxu0 0
        %915 = vmatpush1.bf16.xpose.msra.mxu0 0
        %916 = vmatprep.subr.bf16.mxu0 0
        %917 = vmatpush1.bf16.xpose.msra.mxu0 0
        %918 = vmatprep.subr.bf16.mxu0 0
        %919 = vmatpush1.bf16.xpose.msra.mxu0 0
        %920 = vmatprep.subr.bf16.mxu0 0
        %921 = vmatpush1.bf16.xpose.msra.mxu0 0
        %922 = vmatprep.subr.bf16.mxu0 0
        %923 = vmatpush1.bf16.xpose.msra.mxu0 0
        %924 = vmatprep.subr.bf16.mxu0 0
        %925 = vmatpush1.bf16.xpose.msra.mxu0 0
        %926 = vmatprep.subr.bf16.mxu0 0
        %927 = vmatpush1.bf16.xpose.msra.mxu0 0
        %928 = vmatprep.subr.bf16.mxu0 0
        %929 = vmatpush1.bf16.xpose.msra.mxu0 0
        %930 = vmatprep.subr.bf16.mxu0 0
        %931 = vmatpush1.bf16.xpose.msra.mxu0 0
        %932 = vmatprep.subr.bf16.mxu0 0
        %933 = vmatpush1.bf16.xpose.msra.mxu0 0
        %934 = vmatprep.subr.bf16.mxu0 0
        %935 = vmatpush1.bf16.xpose.msra.mxu0 0
        %936 = vmatprep.mubr.bf16.mxu0 0
        %937 = vmatmul.mubr.bf16.gmra.mrb[0].mxu0 %v899
        %v938 = vpop.f32.mrb[0].mxu0
        %v939 = vadd.f32 %v895, %v938
        %v940 = vpop.f32.mrb[0].mxu0
        %v941 = vpop.f32.mrb[0].mxu0
        %v942 = vpop.f32.mrb[0].mxu0
        %943 = vdwg.mxu0
        %v945 = vsel %vm897, %v877, 0
        %v948 = vsel %vm897, %v884, 0
        %950 = vmatprep.subr.bf16.mxu0 0
        %951 = vmatpush1.bf16.xpose.msra.mxu0 %v948
        %952 = vmatprep.subr.bf16.mxu0 0
        %953 = vmatpush1.bf16.xpose.msra.mxu0 0
        %954 = vmatprep.subr.bf16.mxu0 0
        %955 = vmatpush1.bf16.xpose.msra.mxu0 0
        %956 = vmatprep.subr.bf16.mxu0 0
        %957 = vmatpush1.bf16.xpose.msra.mxu0 0
        %958 = vmatprep.subr.bf16.mxu0 0
        %959 = vmatpush1.bf16.xpose.msra.mxu0 0
        %960 = vmatprep.subr.bf16.mxu0 0
        %961 = vmatpush1.bf16.xpose.msra.mxu0 0
        %962 = vmatprep.subr.bf16.mxu0 0
        %963 = vmatpush1.bf16.xpose.msra.mxu0 0
        %964 = vmatprep.subr.bf16.mxu0 0
        %965 = vmatpush1.bf16.xpose.msra.mxu0 0
        %966 = vmatprep.subr.bf16.mxu0 0
        %967 = vmatpush1.bf16.xpose.msra.mxu0 0
        %968 = vmatprep.subr.bf16.mxu0 0
        %969 = vmatpush1.bf16.xpose.msra.mxu0 0
        %970 = vmatprep.subr.bf16.mxu0 0
        %971 = vmatpush1.bf16.xpose.msra.mxu0 0
        %972 = vmatprep.subr.bf16.mxu0 0
        %973 = vmatpush1.bf16.xpose.msra.mxu0 0
        %974 = vmatprep.subr.bf16.mxu0 0
        %975 = vmatpush1.bf16.xpose.msra.mxu0 0
        %976 = vmatprep.subr.bf16.mxu0 0
        %977 = vmatpush1.bf16.xpose.msra.mxu0 0
        %978 = vmatprep.subr.bf16.mxu0 0
        %979 = vmatpush1.bf16.xpose.msra.mxu0 0
        %980 = vmatprep.subr.bf16.mxu0 0
        %981 = vmatpush1.bf16.xpose.msra.mxu0 0
        %982 = vmatprep.mubr.bf16.mxu0 0
        %983 = vmatmul.mubr.bf16.gmra.mrb[0].mxu0 %v945
        %v984 = vpop.f32.mrb[0].mxu0
        %v985 = vadd.f32 %v895, %v984
        %v986 = vpop.f32.mrb[0].mxu0
        %v987 = vpop.f32.mrb[0].mxu0
        %v988 = vpop.f32.mrb[0].mxu0
        %989 = vdwg.mxu0
        %v991 = vsel %vm897, %v878, 0
        %v994 = vsel %vm897, %v885, 0
        %996 = vmatprep.subr.bf16.mxu0 0
        %997 = vmatpush1.bf16.xpose.msra.mxu0 %v994
        %998 = vmatprep.subr.bf16.mxu0 0
        %999 = vmatpush1.bf16.xpose.msra.mxu0 0
        %1000 = vmatprep.subr.bf16.mxu0 0
        %1001 = vmatpush1.bf16.xpose.msra.mxu0 0
        %1002 = vmatprep.subr.bf16.mxu0 0
        %1003 = vmatpush1.bf16.xpose.msra.mxu0 0
        %1004 = vmatprep.subr.bf16.mxu0 0
        %1005 = vmatpush1.bf16.xpose.msra.mxu0 0
        %1006 = vmatprep.subr.bf16.mxu0 0
        %1007 = vmatpush1.bf16.xpose.msra.mxu0 0
        %1008 = vmatprep.subr.bf16.mxu0 0
        %1009 = vmatpush1.bf16.xpose.msra.mxu0 0
        %1010 = vmatprep.subr.bf16.mxu0 0
        %1011 = vmatpush1.bf16.xpose.msra.mxu0 0
        %1012 = vmatprep.subr.bf16.mxu0 0
        %1013 = vmatpush1.bf16.xpose.msra.mxu0 0
        %1014 = vmatprep.subr.bf16.mxu0 0
        %1015 = vmatpush1.bf16.xpose.msra.mxu0 0
        %1016 = vmatprep.subr.bf16.mxu0 0
        %1017 = vmatpush1.bf16.xpose.msra.mxu0 0
        %1018 = vmatprep.subr.bf16.mxu0 0
        %1019 = vmatpush1.bf16.xpose.msra.mxu0 0
        %1020 = vmatprep.subr.bf16.mxu0 0
        %1021 = vmatpush1.bf16.xpose.msra.mxu0 0
        %1022 = vmatprep.subr.bf16.mxu0 0
        %1023 = vmatpush1.bf16.xpose.msra.mxu0 0
        %1024 = vmatprep.subr.bf16.mxu0 0
        %1025 = vmatpush1.bf16.xpose.msra.mxu0 0
        %1026 = vmatprep.subr.bf16.mxu0 0
        %1027 = vmatpush1.bf16.xpose.msra.mxu0 0
        %1028 = vmatprep.mubr.bf16.mxu0 0
        %1029 = vmatmul.mubr.bf16.gmra.mrb[0].mxu0 %v991
        %v1030 = vpop.f32.mrb[0].mxu0
        %v1031 = vadd.f32 %v895, %v1030
        %v1032 = vpop.f32.mrb[0].mxu0
        %v1033 = vpop.f32.mrb[0].mxu0
        %v1034 = vpop.f32.mrb[0].mxu0
        %1035 = vdwg.mxu0
        %v1037 = vsel %vm897, %v879, 0
        %v1040 = vsel %vm897, %v886, 0
        %1042 = vmatprep.subr.bf16.mxu0 0
        %1043 = vmatpush1.bf16.xpose.msra.mxu0 %v1040
        %1044 = vmatprep.subr.bf16.mxu0 0
        %1045 = vmatpush1.bf16.xpose.msra.mxu0 0
        %1046 = vmatprep.subr.bf16.mxu0 0
        %1047 = vmatpush1.bf16.xpose.msra.mxu0 0
        %1048 = vmatprep.subr.bf16.mxu0 0
        %1049 = vmatpush1.bf16.xpose.msra.mxu0 0
        %1050 = vmatprep.subr.bf16.mxu0 0
        %1051 = vmatpush1.bf16.xpose.msra.mxu0 0
        %1052 = vmatprep.subr.bf16.mxu0 0
        %1053 = vmatpush1.bf16.xpose.msra.mxu0 0
        %1054 = vmatprep.subr.bf16.mxu0 0
        %1055 = vmatpush1.bf16.xpose.msra.mxu0 0
        %1056 = vmatprep.subr.bf16.mxu0 0
        %1057 = vmatpush1.bf16.xpose.msra.mxu0 0
        %1058 = vmatprep.subr.bf16.mxu0 0
        %1059 = vmatpush1.bf16.xpose.msra.mxu0 0
        %1060 = vmatprep.subr.bf16.mxu0 0
        %1061 = vmatpush1.bf16.xpose.msra.mxu0 0
        %1062 = vmatprep.subr.bf16.mxu0 0
        %1063 = vmatpush1.bf16.xpose.msra.mxu0 0
        %1064 = vmatprep.subr.bf16.mxu0 0
        %1065 = vmatpush1.bf16.xpose.msra.mxu0 0
        %1066 = vmatprep.subr.bf16.mxu0 0
        %1067 = vmatpush1.bf16.xpose.msra.mxu0 0
        %1068 = vmatprep.subr.bf16.mxu0 0
        %1069 = vmatpush1.bf16.xpose.msra.mxu0 0
        %1070 = vmatprep.subr.bf16.mxu0 0
        %1071 = vmatpush1.bf16.xpose.msra.mxu0 0
        %1072 = vmatprep.subr.bf16.mxu0 0
        %1073 = vmatpush1.bf16.xpose.msra.mxu0 0
        %1074 = vmatprep.mubr.bf16.mxu0 0
        %1075 = vmatmul.mubr.bf16.gmra.mrb[0].mxu0 %v1037
        %v1076 = vpop.f32.mrb[0].mxu0
        %v1077 = vadd.f32 %v895, %v1076
        %v1078 = vpop.f32.mrb[0].mxu0
        %v1079 = vpop.f32.mrb[0].mxu0
        %v1080 = vpop.f32.mrb[0].mxu0
        %1081 = vdwg.mxu0
        %v1082 = vsel %vm897, %v939, -inf
        %1083 = vmax.xlane.f32.xlu0 %v1082
        %v1084 = vpop.xlane.xlu0 %1083
        %v1085 = vsel %vm897, %v985, -inf
        %1086 = vmax.xlane.f32.xlu0 %v1085
        %v1087 = vpop.xlane.xlu0 %1086
        %v1088 = vsel %vm897, %v1031, -inf
        %1089 = vmax.xlane.f32.xlu0 %v1088
        %v1090 = vpop.xlane.xlu0 %1089
        %v1091 = vsel %vm897, %v1077, -inf
        %1092 = vmax.xlane.f32.xlu0 %v1091
        %v1093 = vpop.xlane.xlu0 %1092
        %v1094 = vsub.f32 -inf, %v1084
        %v1095 = vsub.f32 -inf, %v1087
        %v1096 = vsub.f32 -inf, %v1090
        %v1097 = vsub.f32 -inf, %v1093
        %v1098 = vmul.f32 %v1094, 1.442695
        %v1099 = vpow.pop %v1098
        %v1100 = vmul.f32 %v1095, 1.442695
        %v1101 = vpow.pop %v1100
        %v1102 = vmul.f32 %v1096, 1.442695
        %v1103 = vpow.pop %v1102
        %v1104 = vmul.f32 %v1097, 1.442695
        %v1105 = vpow.pop %v1104
        %v1106 = vsub.f32 %v939, %v1084
        %v1107 = vsub.f32 %v985, %v1087
        %v1108 = vsub.f32 %v1031, %v1090
        %v1109 = vsub.f32 %v1077, %v1093
        %v1110 = vmul.f32 %v1106, 1.442695
        %v1111 = vpow.pop %v1110
        %v1112 = vmul.f32 %v1107, 1.442695
        %v1113 = vpow.pop %v1112
        %v1114 = vmul.f32 %v1108, 1.442695
        %v1115 = vpow.pop %v1114
        %v1116 = vmul.f32 %v1109, 1.442695
        %v1117 = vpow.pop %v1116
        %v1118 = vmul.f32 %v1099, 0.0
        %v1119 = vmul.f32 %v1101, 0.0
        %v1120 = vmul.f32 %v1103, 0.0
        %v1121 = vmul.f32 %v1105, 0.0
        %v1122 = vsel %vm897, %v1111, 0.0
        %1123 = vadd.xlane.f32.xlu0 %v1122
        %v1124 = vpop.xlane.xlu0 %1123
        %v1125 = vsel %vm897, %v1113, 0.0
        %1126 = vadd.xlane.f32.xlu0 %v1125
        %v1127 = vpop.xlane.xlu0 %1126
        %v1128 = vsel %vm897, %v1115, 0.0
        %1129 = vadd.xlane.f32.xlu0 %v1128
        %v1130 = vpop.xlane.xlu0 %1129
        %v1131 = vsel %vm897, %v1117, 0.0
        %1132 = vadd.xlane.f32.xlu0 %v1131
        %v1133 = vpop.xlane.xlu0 %1132
        %v1134 = vadd.f32 %v1118, %v1124
        %v1135 = vadd.f32 %v1119, %v1127
        %v1136 = vadd.f32 %v1120, %v1130
        %v1137 = vadd.f32 %v1121, %v1133
        %v1138 = vpack.c.bf16 %v1111, %v1111
        %v1139 = vpack.c.bf16 %v1113, %v1113
        %v1140 = vpack.c.bf16 %v1115, %v1115
        %v1141 = vpack.c.bf16 %v1117, %v1117
        %v1143 = vsel %vm897, %v1138, 0
        %vm1145 = vcmask 1043456
        %v1147 = vsel %vm1145, %v887, 0
        %1149 = vmatprep.subr.bf16.mxu0 0
        %1150 = vmatpush1.bf16.msra.mxu0 %v1147
        %1151 = vmatprep.subr.bf16.mxu0 0
        %1152 = vmatpush1.bf16.msra.mxu0 0
        %1153 = vmatprep.subr.bf16.mxu0 0
        %1154 = vmatpush1.bf16.msra.mxu0 0
        %1155 = vmatprep.subr.bf16.mxu0 0
        %1156 = vmatpush1.bf16.msra.mxu0 0
        %1157 = vmatprep.subr.bf16.mxu0 0
        %1158 = vmatpush1.bf16.msra.mxu0 0
        %1159 = vmatprep.subr.bf16.mxu0 0
        %1160 = vmatpush1.bf16.msra.mxu0 0
        %1161 = vmatprep.subr.bf16.mxu0 0
        %1162 = vmatpush1.bf16.msra.mxu0 0
        %1163 = vmatprep.subr.bf16.mxu0 0
        %1164 = vmatpush1.bf16.msra.mxu0 0
        %1165 = vmatprep.subr.bf16.mxu0 0
        %1166 = vmatpush1.bf16.msra.mxu0 0
        %1167 = vmatprep.subr.bf16.mxu0 0
        %1168 = vmatpush1.bf16.msra.mxu0 0
        %1169 = vmatprep.subr.bf16.mxu0 0
        %1170 = vmatpush1.bf16.msra.mxu0 0
        %1171 = vmatprep.subr.bf16.mxu0 0
        %1172 = vmatpush1.bf16.msra.mxu0 0
        %1173 = vmatprep.subr.bf16.mxu0 0
        %1174 = vmatpush1.bf16.msra.mxu0 0
        %1175 = vmatprep.subr.bf16.mxu0 0
        %1176 = vmatpush1.bf16.msra.mxu0 0
        %1177 = vmatprep.subr.bf16.mxu0 0
        %1178 = vmatpush1.bf16.msra.mxu0 0
        %1179 = vmatprep.subr.bf16.mxu0 0
        %1180 = vmatpush1.bf16.msra.mxu0 0
        %1181 = vmatprep.mubr.bf16.mxu0 0
        %1182 = vmatmul.mubr.bf16.gmra.mrb[0].mxu0 %v1143
        %v1183 = vpop.f32.mrb[0].mxu0
        %v1184 = vadd.f32 0.0, %v1183
        %v1185 = vpop.f32.mrb[0].mxu0
        %v1186 = vpop.f32.mrb[0].mxu0
        %v1187 = vpop.f32.mrb[0].mxu0
        %1188 = vdwg.mxu0
        %v1190 = vsel %vm897, %v1139, 0
        %v1193 = vsel %vm1145, %v888, 0
        %1195 = vmatprep.subr.bf16.mxu0 0
        %1196 = vmatpush1.bf16.msra.mxu0 %v1193
        %1197 = vmatprep.subr.bf16.mxu0 0
        %1198 = vmatpush1.bf16.msra.mxu0 0
        %1199 = vmatprep.subr.bf16.mxu0 0
        %1200 = vmatpush1.bf16.msra.mxu0 0
        %1201 = vmatprep.subr.bf16.mxu0 0
        %1202 = vmatpush1.bf16.msra.mxu0 0
        %1203 = vmatprep.subr.bf16.mxu0 0
        %1204 = vmatpush1.bf16.msra.mxu0 0
        %1205 = vmatprep.subr.bf16.mxu0 0
        %1206 = vmatpush1.bf16.msra.mxu0 0
        %1207 = vmatprep.subr.bf16.mxu0 0
        %1208 = vmatpush1.bf16.msra.mxu0 0
        %1209 = vmatprep.subr.bf16.mxu0 0
        %1210 = vmatpush1.bf16.msra.mxu0 0
        %1211 = vmatprep.subr.bf16.mxu0 0
        %1212 = vmatpush1.bf16.msra.mxu0 0
        %1213 = vmatprep.subr.bf16.mxu0 0
        %1214 = vmatpush1.bf16.msra.mxu0 0
        %1215 = vmatprep.subr.bf16.mxu0 0
        %1216 = vmatpush1.bf16.msra.mxu0 0
        %1217 = vmatprep.subr.bf16.mxu0 0
        %1218 = vmatpush1.bf16.msra.mxu0 0
        %1219 = vmatprep.subr.bf16.mxu0 0
        %1220 = vmatpush1.bf16.msra.mxu0 0
        %1221 = vmatprep.subr.bf16.mxu0 0
        %1222 = vmatpush1.bf16.msra.mxu0 0
        %1223 = vmatprep.subr.bf16.mxu0 0
        %1224 = vmatpush1.bf16.msra.mxu0 0
        %1225 = vmatprep.subr.bf16.mxu0 0
        %1226 = vmatpush1.bf16.msra.mxu0 0
        %1227 = vmatprep.mubr.bf16.mxu0 0
        %1228 = vmatmul.mubr.bf16.gmra.mrb[0].mxu0 %v1190
        %v1229 = vpop.f32.mrb[0].mxu0
        %v1230 = vadd.f32 0.0, %v1229
        %v1231 = vpop.f32.mrb[0].mxu0
        %v1232 = vpop.f32.mrb[0].mxu0
        %v1233 = vpop.f32.mrb[0].mxu0
        %1234 = vdwg.mxu0
        %v1236 = vsel %vm897, %v1140, 0
        %v1239 = vsel %vm1145, %v889, 0
        %1241 = vmatprep.subr.bf16.mxu0 0
        %1242 = vmatpush1.bf16.msra.mxu0 %v1239
        %1243 = vmatprep.subr.bf16.mxu0 0
        %1244 = vmatpush1.bf16.msra.mxu0 0
        %1245 = vmatprep.subr.bf16.mxu0 0
        %1246 = vmatpush1.bf16.msra.mxu0 0
        %1247 = vmatprep.subr.bf16.mxu0 0
        %1248 = vmatpush1.bf16.msra.mxu0 0
        %1249 = vmatprep.subr.bf16.mxu0 0
        %1250 = vmatpush1.bf16.msra.mxu0 0
        %1251 = vmatprep.subr.bf16.mxu0 0
        %1252 = vmatpush1.bf16.msra.mxu0 0
        %1253 = vmatprep.subr.bf16.mxu0 0
        %1254 = vmatpush1.bf16.msra.mxu0 0
        %1255 = vmatprep.subr.bf16.mxu0 0
        %1256 = vmatpush1.bf16.msra.mxu0 0
        %1257 = vmatprep.subr.bf16.mxu0 0
        %1258 = vmatpush1.bf16.msra.mxu0 0
        %1259 = vmatprep.subr.bf16.mxu0 0
        %1260 = vmatpush1.bf16.msra.mxu0 0
        %1261 = vmatprep.subr.bf16.mxu0 0
        %1262 = vmatpush1.bf16.msra.mxu0 0
        %1263 = vmatprep.subr.bf16.mxu0 0
        %1264 = vmatpush1.bf16.msra.mxu0 0
        %1265 = vmatprep.subr.bf16.mxu0 0
        %1266 = vmatpush1.bf16.msra.mxu0 0
        %1267 = vmatprep.subr.bf16.mxu0 0
        %1268 = vmatpush1.bf16.msra.mxu0 0
        %1269 = vmatprep.subr.bf16.mxu0 0
        %1270 = vmatpush1.bf16.msra.mxu0 0
        %1271 = vmatprep.subr.bf16.mxu0 0
        %1272 = vmatpush1.bf16.msra.mxu0 0
        %1273 = vmatprep.mubr.bf16.mxu0 0
        %1274 = vmatmul.mubr.bf16.gmra.mrb[0].mxu0 %v1236
        %v1275 = vpop.f32.mrb[0].mxu0
        %v1276 = vadd.f32 0.0, %v1275
        %v1277 = vpop.f32.mrb[0].mxu0
        %v1278 = vpop.f32.mrb[0].mxu0
        %v1279 = vpop.f32.mrb[0].mxu0
        %1280 = vdwg.mxu0
        %v1282 = vsel %vm897, %v1141, 0
        %v1285 = vsel %vm1145, %v890, 0
        %1287 = vmatprep.subr.bf16.mxu0 0
        %1288 = vmatpush1.bf16.msra.mxu0 %v1285
        %1289 = vmatprep.subr.bf16.mxu0 0
        %1290 = vmatpush1.bf16.msra.mxu0 0
        %1291 = vmatprep.subr.bf16.mxu0 0
        %1292 = vmatpush1.bf16.msra.mxu0 0
        %1293 = vmatprep.subr.bf16.mxu0 0
        %1294 = vmatpush1.bf16.msra.mxu0 0
        %1295 = vmatprep.subr.bf16.mxu0 0
        %1296 = vmatpush1.bf16.msra.mxu0 0
        %1297 = vmatprep.subr.bf16.mxu0 0
        %1298 = vmatpush1.bf16.msra.mxu0 0
        %1299 = vmatprep.subr.bf16.mxu0 0
        %1300 = vmatpush1.bf16.msra.mxu0 0
        %1301 = vmatprep.subr.bf16.mxu0 0
        %1302 = vmatpush1.bf16.msra.mxu0 0
        %1303 = vmatprep.subr.bf16.mxu0 0
        %1304 = vmatpush1.bf16.msra.mxu0 0
        %1305 = vmatprep.subr.bf16.mxu0 0
        %1306 = vmatpush1.bf16.msra.mxu0 0
        %1307 = vmatprep.subr.bf16.mxu0 0
        %1308 = vmatpush1.bf16.msra.mxu0 0
        %1309 = vmatprep.subr.bf16.mxu0 0
        %1310 = vmatpush1.bf16.msra.mxu0 0
        %1311 = vmatprep.subr.bf16.mxu0 0
        %1312 = vmatpush1.bf16.msra.mxu0 0
        %1313 = vmatprep.subr.bf16.mxu0 0
        %1314 = vmatpush1.bf16.msra.mxu0 0
        %1315 = vmatprep.subr.bf16.mxu0 0
        %1316 = vmatpush1.bf16.msra.mxu0 0
        %1317 = vmatprep.subr.bf16.mxu0 0
        %1318 = vmatpush1.bf16.msra.mxu0 0
        %1319 = vmatprep.mubr.bf16.mxu0 0
        %1320 = vmatmul.mubr.bf16.gmra.mrb[0].mxu0 %v1282
        %v1321 = vpop.f32.mrb[0].mxu0
        %v1322 = vadd.f32 0.0, %v1321
        %v1323 = vpop.f32.mrb[0].mxu0
        %v1324 = vpop.f32.mrb[0].mxu0
        %v1325 = vpop.f32.mrb[0].mxu0
        %1326 = vdwg.mxu0
        %v1327 = vadd.f32 %v1118, %v1184
        %v1328 = vadd.f32 %v1119, %v1230
        %v1329 = vadd.f32 %v1120, %v1276
        %v1330 = vadd.f32 %v1121, %v1322
        %v1331 = vrcp.pop %v1134
        %v1332 = vmul.f32 %v1327, %v1331
        %v1333 = vrcp.pop %v1135
        %v1334 = vmul.f32 %v1328, %v1333
        %v1335 = vrcp.pop %v1136
        %v1336 = vmul.f32 %v1329, %v1335
        %v1337 = vrcp.pop %v1137
        %v1338 = vmul.f32 %v1330, %v1337
        %v1339 = vpack.c.bf16 %v1332, %v1332
        %1340 = vst.msk [vmem:[#allocation5] sm:$0xf] %vm856, %v1339
        %v1341 = vpack.c.bf16 %v1334, %v1334
        %v1343 = vunpack.c.l.b16 %v1341
        %v1344 = vpack.c.b16 %v1343, %v1343
        %1345 = vrot.lane.b32.xlu0 %v1344, 8
        %v1346 = vpop.permute.xlu0 %1345
        %vm1348 = vcmask 126016
        %1349 = vst.msk [vmem:[#allocation5] sm:$0xf] %vm1348, %v1346
        %v1350 = vpack.c.bf16 %v1336, %v1336
        %v1352 = vunpack.c.l.b16 %v1350
        %v1353 = vpack.c.b16 %v1352, %v1352
        %1354 = vrot.lane.b32.xlu0 %v1353, 16
        %v1355 = vpop.permute.xlu0 %1354
        %vm1357 = vcmask 191616
        %1358 = vst.msk [vmem:[#allocation5] sm:$0xf] %vm1357, %v1355
        %v1359 = vpack.c.bf16 %v1338, %v1338
        %v1361 = vunpack.c.l.b16 %v1359
        %v1362 = vpack.c.b16 %v1361, %v1361
        %1363 = vrot.lane.b32.xlu0 %v1362, 24
        %v1364 = vpop.permute.xlu0 %1363
        %vm1366 = vcmask 257216
        %1367 = vst.msk [vmem:[#allocation5] sm:$0xf] %vm1366, %v1364
        %v1368 = vld [vmem:[#allocation5] sm:$0xf]
        %v1369 = vld [vmem:[#allocation12] sm:$0xf]
        %v1370 = vld [vmem:[#allocation12 + $0x4] sm:$0xf]
        %v1371 = vld [vmem:[#allocation12 + $0x8] sm:$0xf]
        %v1372 = vld [vmem:[#allocation12 + $0xc] sm:$0xf]
        %v1373 = vld [vmem:[#allocation14] sm:$0x1]
        %v1375 = vlaneseq
        %v1376 = vshrl.u32 %v1375, 7
        %v1377 = vsub.s32 0, %v1376
        %v1378 = vrot.slane %v1373, %v1377
        %v1384 = vunpack.c.l.b16 %v1369
        %v1385 = vunpack.c.l.b16 %v1370
        %v1386 = vunpack.c.l.b16 %v1371
        %v1387 = vunpack.c.l.b16 %v1372
        %v1388 = vpack.c.b16 %v1385, %v1384
        %v1389 = vpack.c.b16 %v1387, %v1386
        %v1393 = vsel %vm810, %v1368, 0
        %1395 = vmatprep.subr.bf16.mxu0 0
        %1396 = vmatpush1.bf16.msra.mxu0 %v1388
        %1397 = vmatprep.subr.bf16.mxu0 0
        %1398 = vmatpush1.bf16.msra.mxu0 %v1389
        %1399 = vmatprep.subr.bf16.mxu0 0
        %1400 = vmatpush1.bf16.msra.mxu0 0
        %1401 = vmatprep.subr.bf16.mxu0 0
        %1402 = vmatpush1.bf16.msra.mxu0 0
        %1403 = vmatprep.subr.bf16.mxu0 0
        %1404 = vmatpush1.bf16.msra.mxu0 0
        %1405 = vmatprep.subr.bf16.mxu0 0
        %1406 = vmatpush1.bf16.msra.mxu0 0
        %1407 = vmatprep.subr.bf16.mxu0 0
        %1408 = vmatpush1.bf16.msra.mxu0 0
        %1409 = vmatprep.subr.bf16.mxu0 0
        %1410 = vmatpush1.bf16.msra.mxu0 0
        %1411 = vmatprep.subr.bf16.mxu0 0
        %1412 = vmatpush1.bf16.msra.mxu0 0
        %1413 = vmatprep.subr.bf16.mxu0 0
        %1414 = vmatpush1.bf16.msra.mxu0 0
        %1415 = vmatprep.subr.bf16.mxu0 0
        %1416 = vmatpush1.bf16.msra.mxu0 0
        %1417 = vmatprep.subr.bf16.mxu0 0
        %1418 = vmatpush1.bf16.msra.mxu0 0
        %1419 = vmatprep.subr.bf16.mxu0 0
        %1420 = vmatpush1.bf16.msra.mxu0 0
        %1421 = vmatprep.subr.bf16.mxu0 0
        %1422 = vmatpush1.bf16.msra.mxu0 0
        %1423 = vmatprep.subr.bf16.mxu0 0
        %1424 = vmatpush1.bf16.msra.mxu0 0
        %1425 = vmatprep.subr.bf16.mxu0 0
        %1426 = vmatpush1.bf16.msra.mxu0 0
        %1427 = vmatprep.mubr.bf16.mxu0 0
        %1428 = vmatmul.mubr.bf16.gmra.mrb[0].mxu0 %v1393
        %v1429 = vpop.f32.mrb[0].mxu0
        %v1430 = vadd.f32 %v1378, %v1429
        %v1431 = vpop.f32.mrb[0].mxu0
        %v1432 = vpop.f32.mrb[0].mxu0
        %v1433 = vpop.f32.mrb[0].mxu0
        %1434 = vdwg.mxu0
        %v1435 = vadd.f32 %v785, %v1430
        %v1436 = vld [vmem:[%s13] sm:$0x1]
        %v1437 = vld [vmem:[%s14] sm:$0x1]
        %v1438 = vsel %vm810, %v1435, 0.0
        %1439 = vadd.xlane.f32.xlu0 %v1438
        %v1440 = vpop.xlane.xlu0 %1439
        %v1441 = vrcp.pop 32.0
        %v1442 = vmul.f32 %v1440, %v1441
        %v1443 = vsub.f32 %v1435, %v1442
        %v1444 = vmul.f32 %v1443, %v1443
        %v1445 = vsel %vm810, %v1444, 0.0
        %1446 = vadd.xlane.f32.xlu0 %v1445
        %v1447 = vpop.xlane.xlu0 %1446
        %v1448 = vmul.f32 %v1447, %v1441
        %v1449 = vadd.f32 %v1448, 1e-05
        %v1450 = vrsqrt.pop %v1449
        %v1451 = vmul.f32 %v1443, %v1450
        %v1453 = vlaneseq
        %v1454 = vshrl.u32 %v1453, 7
        %v1455 = vsub.s32 0, %v1454
        %v1456 = vrot.slane %v1436, %v1455
        %v1458 = vmul.f32 %v1451, %v1456
        %v1460 = vlaneseq
        %v1461 = vshrl.u32 %v1460, 7
        %v1462 = vsub.s32 0, %v1461
        %v1463 = vrot.slane %v1437, %v1462
        %v1465 = vadd.f32 %v1458, %v1463
        %v1466 = vpack.c.bf16 %v1465, %v1465
        %v1467 = vld [vmem:[%s9] sm:$0xf]
        %v1468 = vld [vmem:[%s9 + $0x4] sm:$0xf]
        %v1469 = vld [vmem:[%s9 + $0x8] sm:$0xf]
        %v1470 = vld [vmem:[%s9 + $0xc] sm:$0xf]
        %v1471 = vld [vmem:[%s10] sm:$0x1]
        %v1473 = vlaneseq
        %v1474 = vshrl.u32 %v1473, 7
        %v1475 = vsub.s32 0, %v1474
        %v1476 = vrot.slane %v1471, %v1475
        %v1482 = vunpack.c.l.b16 %v1467
        %v1483 = vunpack.c.l.b16 %v1468
        %v1484 = vunpack.c.l.b16 %v1469
        %v1485 = vunpack.c.l.b16 %v1470
        %v1486 = vpack.c.b16 %v1483, %v1482
        %v1487 = vpack.c.b16 %v1485, %v1484
        %v1491 = vsel %vm810, %v1466, 0
        %1493 = vmatprep.subr.bf16.mxu0 0
        %1494 = vmatpush1.bf16.msra.mxu0 %v1486
        %1495 = vmatprep.subr.bf16.mxu0 0
        %1496 = vmatpush1.bf16.msra.mxu0 %v1487
        %1497 = vmatprep.subr.bf16.mxu0 0
        %1498 = vmatpush1.bf16.msra.mxu0 0
        %1499 = vmatprep.subr.bf16.mxu0 0
        %1500 = vmatpush1.bf16.msra.mxu0 0
        %1501 = vmatprep.subr.bf16.mxu0 0
        %1502 = vmatpush1.bf16.msra.mxu0 0
        %1503 = vmatprep.subr.bf16.mxu0 0
        %1504 = vmatpush1.bf16.msra.mxu0 0
        %1505 = vmatprep.subr.bf16.mxu0 0
        %1506 = vmatpush1.bf16.msra.mxu0 0
        %1507 = vmatprep.subr.bf16.mxu0 0
        %1508 = vmatpush1.bf16.msra.mxu0 0
        %1509 = vmatprep.subr.bf16.mxu0 0
        %1510 = vmatpush1.bf16.msra.mxu0 0
        %1511 = vmatprep.subr.bf16.mxu0 0
        %1512 = vmatpush1.bf16.msra.mxu0 0
        %1513 = vmatprep.subr.bf16.mxu0 0
        %1514 = vmatpush1.bf16.msra.mxu0 0
        %1515 = vmatprep.subr.bf16.mxu0 0
        %1516 = vmatpush1.bf16.msra.mxu0 0
        %1517 = vmatprep.subr.bf16.mxu0 0
        %1518 = vmatpush1.bf16.msra.mxu0 0
        %1519 = vmatprep.subr.bf16.mxu0 0
        %1520 = vmatpush1.bf16.msra.mxu0 0
        %1521 = vmatprep.subr.bf16.mxu0 0
        %1522 = vmatpush1.bf16.msra.mxu0 0
        %1523 = vmatprep.subr.bf16.mxu0 0
        %1524 = vmatpush1.bf16.msra.mxu0 0
        %1525 = vmatprep.mubr.bf16.mxu0 0
        %1526 = vmatmul.mubr.bf16.gmra.mrb[0].mxu0 %v1491
        %v1527 = vpop.f32.mrb[0].mxu0
        %v1528 = vadd.f32 %v1476, %v1527
        %v1529 = vpop.f32.mrb[0].mxu0
        %v1530 = vpop.f32.mrb[0].mxu0
        %v1531 = vpop.f32.mrb[0].mxu0
        %1532 = vdwg.mxu0
        %v1533 = vmax.f32 %v1528, 0.0
        %v1534 = vpack.c.bf16 %v1533, %v1533
        %v1535 = vld [vmem:[%s11] sm:$0xf]
        %v1536 = vld [vmem:[%s11 + $0x4] sm:$0xf]
        %v1537 = vld [vmem:[%s11 + $0x8] sm:$0xf]
        %v1538 = vld [vmem:[%s11 + $0xc] sm:$0xf]
        %v1539 = vld [vmem:[%s11 + $0x10] sm:$0xf]
        %v1540 = vld [vmem:[%s11 + $0x14] sm:$0xf]
        %v1541 = vld [vmem:[%s11 + $0x18] sm:$0xf]
        %v1542 = vld [vmem:[%s11 + $0x1c] sm:$0xf]
        %v1543 = vld [vmem:[%s12] sm:$0x1]
        %v1545 = vlaneseq
        %v1546 = vshrl.u32 %v1545, 7
        %v1547 = vsub.s32 0, %v1546
        %v1548 = vrot.slane %v1543, %v1547
        %v1558 = vunpack.c.l.b16 %v1535
        %v1559 = vunpack.c.l.b16 %v1536
        %v1560 = vunpack.c.l.b16 %v1537
        %v1561 = vunpack.c.l.b16 %v1538
        %v1562 = vunpack.c.l.b16 %v1539
        %v1563 = vunpack.c.l.b16 %v1540
        %v1564 = vunpack.c.l.b16 %v1541
        %v1565 = vunpack.c.l.b16 %v1542
        %v1566 = vpack.c.b16 %v1559, %v1558
        %v1567 = vpack.c.b16 %v1561, %v1560
        %v1568 = vpack.c.b16 %v1563, %v1562
        %v1569 = vpack.c.b16 %v1565, %v1564
        %vm1574 = vcmask 523264
        %v1576 = vsel %vm1574, %v1534, 0
        %1578 = vmatprep.subr.bf16.mxu0 0
        %1579 = vmatpush1.bf16.msra.mxu0 %v1566
        %1580 = vmatprep.subr.bf16.mxu0 0
        %1581 = vmatpush1.bf16.msra.mxu0 %v1567
        %1582 = vmatprep.subr.bf16.mxu0 0
        %1583 = vmatpush1.bf16.msra.mxu0 %v1568
        %1584 = vmatprep.subr.bf16.mxu0 0
        %1585 = vmatpush1.bf16.msra.mxu0 %v1569
        %1586 = vmatprep.subr.bf16.mxu0 0
        %1587 = vmatpush1.bf16.msra.mxu0 0
        %1588 = vmatprep.subr.bf16.mxu0 0
        %1589 = vmatpush1.bf16.msra.mxu0 0
        %1590 = vmatprep.subr.bf16.mxu0 0
        %1591 = vmatpush1.bf16.msra.mxu0 0
        %1592 = vmatprep.subr.bf16.mxu0 0
        %1593 = vmatpush1.bf16.msra.mxu0 0
        %1594 = vmatprep.subr.bf16.mxu0 0
        %1595 = vmatpush1.bf16.msra.mxu0 0
        %1596 = vmatprep.subr.bf16.mxu0 0
        %1597 = vmatpush1.bf16.msra.mxu0 0
        %1598 = vmatprep.subr.bf16.mxu0 0
        %1599 = vmatpush1.bf16.msra.mxu0 0
        %1600 = vmatprep.subr.bf16.mxu0 0
        %1601 = vmatpush1.bf16.msra.mxu0 0
        %1602 = vmatprep.subr.bf16.mxu0 0
        %1603 = vmatpush1.bf16.msra.mxu0 0
        %1604 = vmatprep.subr.bf16.mxu0 0
        %1605 = vmatpush1.bf16.msra.mxu0 0
        %1606 = vmatprep.subr.bf16.mxu0 0
        %1607 = vmatpush1.bf16.msra.mxu0 0
        %1608 = vmatprep.subr.bf16.mxu0 0
        %1609 = vmatpush1.bf16.msra.mxu0 0
        %1610 = vmatprep.mubr.bf16.mxu0 0
        %1611 = vmatmul.mubr.bf16.gmra.mrb[0].mxu0 %v1576
        %v1612 = vpop.f32.mrb[0].mxu0
        %v1613 = vadd.f32 %v1548, %v1612
        %v1614 = vpop.f32.mrb[0].mxu0
        %v1615 = vpop.f32.mrb[0].mxu0
        %v1616 = vpop.f32.mrb[0].mxu0
        %1617 = vdwg.mxu0
        %v1618 = vadd.f32 %v1465, %v1613
        %v1619 = vld [vmem:[%s15] sm:$0x1]
        %v1620 = vld [vmem:[%s16] sm:$0x1]
        %v1621 = vsel %vm810, %v1618, 0.0
        %1622 = vadd.xlane.f32.xlu0 %v1621
        %v1623 = vpop.xlane.xlu0 %1622
        %v1624 = vmul.f32 %v1623, %v1441
        %v1625 = vsub.f32 %v1618, %v1624
        %v1626 = vmul.f32 %v1625, %v1625
        %v1627 = vsel %vm810, %v1626, 0.0
        %1628 = vadd.xlane.f32.xlu0 %v1627
        %v1629 = vpop.xlane.xlu0 %1628
        %v1630 = vmul.f32 %v1629, %v1441
        %v1631 = vadd.f32 %v1630, 1e-05
        %v1632 = vrsqrt.pop %v1631
        %v1633 = vmul.f32 %v1625, %v1632
        %v1635 = vlaneseq
        %v1636 = vshrl.u32 %v1635, 7
        %v1637 = vsub.s32 0, %v1636
        %v1638 = vrot.slane %v1619, %v1637
        %v1640 = vmul.f32 %v1633, %v1638
        %v1642 = vlaneseq
        %v1643 = vshrl.u32 %v1642, 7
        %v1644 = vsub.s32 0, %v1643
        %v1645 = vrot.slane %v1620, %v1644
        %v1647 = vadd.f32 %v1640, %v1645
        %1648 = vst.msk [vmem:[%s661] sm:$0xff] %vm810, %v1647
        %s1649 = sand.u32 %s432, 1
        %s1650 = scalar_lea.sflag [#allocation8], %s1649
        %s1651 = sand.u32 %s432, 1
        %s1652 = smul.addr %s1651, 8
        %s1653 = scalar_lea.vmem [#allocation15], %s1652
        // Predicated region
        $region113: #{tpu_custom_call.1} parent=87 // pred_check
          %p1654 = pneg %p442
        $region114: #{tpu_custom_call.1} parent=87 // pred_check_branch
          %1656 = sbr.rel (%p1654) target = $region116
        $region115: #{tpu_custom_call.1} parent=87 // pred_region
          %s1658 = ssub.s32 128, 128
          %1659 = vsyncadd %s1650, %s1658
          %s1660 = sadd.s32 %s41, %s40
          %s1661 = smul.addr %s1660, 128
          %s1662 = scalar_lea.hbm %s17, %s1661
          %s1664 = sshll.u32 %s1653, 4
          %s1665 = int_to_ptr.vmem [resolvable:$true] %s1664
          %1667 = dma.vmem_to_hbm [thread:$0]  %s1665, 128, %s1662, %s1650
        $region116: #{tpu_custom_call.1} parent=87 // pred_fallthru
          _
      $region88: #{tpu_custom_call.1} parent=5 // pred_fallthru
        _
      %p1668 = scmp.le.s32.totalorder 2, %s31
      // Predicated region
      $region117: #{tpu_custom_call.1} parent=5 // pred_check
        %p1669 = pneg %p1668
      $region118: #{tpu_custom_call.1} parent=5 // pred_check_branch
        %1671 = sbr.rel (%p1669) target = $region120
      $region119: #{tpu_custom_call.1} parent=5 // pred_region
        %s1672 = ssub.s32 %s31, 2
        // Predicated region
        $region121: #{tpu_custom_call.1} parent=119 // pred_check
          %p1673 = pneg %p448
        $region122: #{tpu_custom_call.1} parent=119 // pred_check_branch
          %1675 = sbr.rel (%p1673) target = $region124
        $region123: #{tpu_custom_call.1} parent=119 // pred_region
          %s1676 = sand.u32 %s433, 1
          %s1677 = scalar_lea.sflag [#allocation8], %s1676
          %s1678 = sand.u32 %s433, 1
          %s1679 = smul.addr %s1678, 8
          %s1680 = scalar_lea.vmem [#allocation15], %s1679
          %1681 = dma.done %s1677, 128
        $region124: #{tpu_custom_call.1} parent=119 // pred_fallthru
          _
      $region120: #{tpu_custom_call.1} parent=5 // pred_fallthru
        _
    $region6: #{tpu_custom_call.1} parent=1 // loop_footer
      %s35 = sadd.s32 1, %s31
    $region7: #{tpu_custom_call.1} parent=1 // loop_footer_branch
      %30 = sbr.rel target = $region3
    $region8: #{tpu_custom_call.1} parent=1 // loop_exit
      _
    %1682 = vsyncpa [#allocation7], 1
    %s1683 = scalar_lea.sflag [#allocation7], 1
    %1684 = vsyncpa %s1683, 1
    %1685 = vsyncpa [#allocation10], 1
    %1686 = vsyncpa [#allocation13], 1
    %1687 = vsyncpa [#allocation8], 1
    %s1688 = scalar_lea.sflag [#allocation8], 1
    %1689 = vsyncpa %s1688, 1

</llo_original>
